<compile_context>
chip_gen: v7x
topology: tpu7x:2x2x1
jax: 0.10.0
libtpu: 0.0.40
codegen_flags: <defaults>
</compile_context>

<pallas_src>
import functools

import jax
import jax.numpy as jnp
from jax.experimental import pallas as pl
from jax.experimental.pallas import tpu as pltpu


def _round_up(x, m):
    return ((x + m - 1) // m) * m


def mlp_kernel(x_ref, w1_ref, b1_ref, w2_ref, b2_ref, w3_ref, b3_ref,
               wf_ref, bf_ref, out_ref):
    # bf16 operands on the MXU with f32 accumulation; bias-add / ReLU in f32.
    h = jnp.dot(x_ref[...], w1_ref[...],
                preferred_element_type=jnp.float32) + b1_ref[...]
    h = jnp.maximum(h, 0.0)
    h = jnp.dot(h.astype(jnp.bfloat16), w2_ref[...],
                preferred_element_type=jnp.float32) + b2_ref[...]
    h = jnp.maximum(h, 0.0)
    h = jnp.dot(h.astype(jnp.bfloat16), w3_ref[...],
                preferred_element_type=jnp.float32) + b3_ref[...]
    h = jnp.maximum(h, 0.0)
    out_ref[...] = jnp.dot(h.astype(jnp.bfloat16), wf_ref[...],
                           preferred_element_type=jnp.float32) + bf_ref[...]


def prepare_params(params, in_pad, hid_pad, out_pad):
    """One-time weight canonicalization (outside the per-call hot path):
    PyTorch (out, in) -> (in, out), zero-pad to aligned shapes, cast weights to
    bf16. Biases stay f32 (vector-path math is f32 on all generations)."""
    w1, b1, w2, b2, w3, b3, wf, bf = params
    hid, _ = w1.shape
    out_size = wf.shape[0]

    def pad2(a, rows, cols):
        return jnp.pad(a, ((0, rows - a.shape[0]), (0, cols - a.shape[1])))

    w1p = pad2(w1.T, in_pad, hid_pad).astype(jnp.bfloat16)
    w2p = pad2(w2.T, hid_pad, hid_pad).astype(jnp.bfloat16)
    w3p = pad2(w3.T, hid_pad, hid_pad).astype(jnp.bfloat16)
    wfp = pad2(wf.T, hid_pad, out_pad).astype(jnp.bfloat16)
    b1p = jnp.pad(b1, (0, hid_pad - hid)).reshape(1, hid_pad).astype(jnp.float32)
    b2p = jnp.pad(b2, (0, hid_pad - hid)).reshape(1, hid_pad).astype(jnp.float32)
    b3p = jnp.pad(b3, (0, hid_pad - hid)).reshape(1, hid_pad).astype(jnp.float32)
    bfp = jnp.pad(bf, (0, out_pad - out_size)).reshape(1, out_pad).astype(jnp.float32)
    return (w1p, b1p, w2p, b2p, w3p, b3p, wfp, bfp)


@functools.partial(jax.jit, static_argnames=("out_size",))
def mlp_forward(x, prepared, out_size):
    """x: [B, C, T] float32. prepared: output of prepare_params.
    Returns [B, out_size] float32."""
    B = x.shape[0]
    x2d = x.reshape(B, -1)                      # x.view(x.shape[0], -1)
    in_size = x2d.shape[1]

    in_pad, hid_pad = prepared[0].shape
    out_pad = prepared[6].shape[1]

    # Batch tiling: at least a sublane multiple (8); 128-row tiles when big.
    tm = 128 if B >= 128 else _round_up(B, 8)
    b_pad = _round_up(B, tm)

    # Zero-pad batch and K (single fused pad), cast activations to bf16 for
    # the MXU path.
    xp = jnp.pad(x2d.astype(jnp.bfloat16),
                 ((0, b_pad - B), (0, in_pad - in_size)))

    grid = (b_pad // tm,)

    flops = 2 * b_pad * (in_pad * hid_pad
                         + 2 * hid_pad * hid_pad
                         + hid_pad * out_pad)
    bytes_accessed = (xp.size * 2
                      + sum(int(w.size) * w.dtype.itemsize for w in prepared)
                      + b_pad * out_pad * 4)

    out_padded = pl.pallas_call(
        mlp_kernel,
        out_shape=jax.ShapeDtypeStruct((b_pad, out_pad), jnp.float32),
        grid=grid,
        in_specs=[
            pl.BlockSpec((tm, in_pad), lambda i: (i, 0)),        # x tile
            pl.BlockSpec((in_pad, hid_pad), lambda i: (0, 0)),   # w1 (resident)
            pl.BlockSpec((1, hid_pad), lambda i: (0, 0)),        # b1
            pl.BlockSpec((hid_pad, hid_pad), lambda i: (0, 0)),  # w2 (resident)
            pl.BlockSpec((1, hid_pad), lambda i: (0, 0)),        # b2
            pl.BlockSpec((hid_pad, hid_pad), lambda i: (0, 0)),  # w3 (resident)
            pl.BlockSpec((1, hid_pad), lambda i: (0, 0)),        # b3
            pl.BlockSpec((hid_pad, out_pad), lambda i: (0, 0)),  # wf (resident)
            pl.BlockSpec((1, out_pad), lambda i: (0, 0)),        # bf
        ],
        out_specs=pl.BlockSpec((tm, out_pad), lambda i: (i, 0)),
        compiler_params=pltpu.CompilerParams(
            dimension_semantics=("parallel",)),
        cost_estimate=pl.CostEstimate(
            flops=flops, transcendentals=0, bytes_accessed=bytes_accessed),
    )(xp, *prepared)

    return out_padded[:B, :out_size]


def init_params(key, input_size, hidden, output_size):
    """Deterministic synthetic init, PyTorch Linear-style uniform ranges."""
    def linear(k, out_f, in_f):
        kw, kb = jax.random.split(k)
        bound = 1.0 / (in_f ** 0.5)
        w = jax.random.uniform(kw, (out_f, in_f), jnp.float32, -bound, bound)
        b = jax.random.uniform(kb, (out_f,), jnp.float32, -bound, bound)
        return w, b

    k1, k2, k3, k4 = jax.random.split(key, 4)
    w1, b1 = linear(k1, hidden, input_size)
    w2, b2 = linear(k2, hidden, hidden)
    w3, b3 = linear(k3, hidden, hidden)
    wf, bf = linear(k4, output_size, hidden)
    return (w1, b1, w2, b2, w3, b3, wf, bf)


def mlp_reference(x, params):
    w1, b1, w2, b2, w3, b3, wf, bf = params
    out = x.reshape(x.shape[0], -1)
    out = jnp.maximum(out @ w1.T + b1, 0.0)
    out = jnp.maximum(out @ w2.T + b2, 0.0)
    out = jnp.maximum(out @ w3.T + b3, 0.0)
    return out @ wf.T + bf


if __name__ == "__main__":
    key = jax.random.PRNGKey(0)
    k_x, k_p = jax.random.split(key)

    B, C, T = 2, 4, 16          # time-series input [B, C, T]
    input_size = C * T          # dataset.input_size after flatten
    hidden = 500                # hard-coded 500 in the module
    output_size = 8             # dataset.output_size

    x = jax.random.normal(k_x, (B, C, T), dtype=jnp.float32)
    params = init_params(k_p, input_size, hidden, output_size)

    # One-time canonicalization (out of the hot path): pad to aligned shapes.
    in_pad = _round_up(input_size, 128)    # 64  -> 128 (lane-dense K for fc1)
    hid_pad = _round_up(hidden, 128)       # 500 -> 512 (MXU/lane aligned)
    out_pad = _round_up(output_size, 128)  # 8   -> 128 (unmasked vst lanes)
    prepared = prepare_params(params, in_pad, hid_pad, out_pad)

    out = mlp_forward(x, prepared, output_size)
    out = jax.block_until_ready(out)

    ref = mlp_reference(x, params)
    assert out.shape == (B, output_size)
    max_err = float(jnp.max(jnp.abs(out - ref)))
    # bf16 MXU operands with f32 accumulation: tolerance loosened vs f32 ref.
    assert jnp.allclose(out, ref, atol=5e-2, rtol=5e-2), (
        f"max abs err {max_err}")

    print("KERNEL_OK")
</pallas_src>

<mosaic_0001>
module attributes {stable_mosaic.version = 11 : i64} {
  func.func @mlp_kernel(%arg0: i32, %arg1: memref<8x128xbf16, #tpu.memory_space<vmem>>, %arg2: memref<128x512xbf16, #tpu.memory_space<vmem>>, %arg3: memref<1x512xf32, #tpu.memory_space<vmem>>, %arg4: memref<512x512xbf16, #tpu.memory_space<vmem>>, %arg5: memref<1x512xf32, #tpu.memory_space<vmem>>, %arg6: memref<512x512xbf16, #tpu.memory_space<vmem>>, %arg7: memref<1x512xf32, #tpu.memory_space<vmem>>, %arg8: memref<512x128xbf16, #tpu.memory_space<vmem>>, %arg9: memref<1x128xf32, #tpu.memory_space<vmem>>, %arg10: memref<8x128xf32, #tpu.memory_space<vmem>>) attributes {dimension_semantics = [#tpu.dimension_semantics<parallel>], iteration_bounds = array<i64: 1>, scalar_prefetch = 0 : i64, scratch_operands = 0 : i64, tpu.core_type = #tpu.core_type<tc>, window_params = [{transform_indices = @transform_0, window_bounds = array<i64: 8, 128>}, {pipeline_mode = #tpu.pipeline_mode<synchronous>, transform_indices = @transform_1, window_bounds = array<i64: 128, 512>}, {pipeline_mode = #tpu.pipeline_mode<synchronous>, transform_indices = @transform_2, window_bounds = array<i64: 1, 512>}, {pipeline_mode = #tpu.pipeline_mode<synchronous>, transform_indices = @transform_3, window_bounds = array<i64: 512, 512>}, {pipeline_mode = #tpu.pipeline_mode<synchronous>, transform_indices = @transform_4, window_bounds = array<i64: 1, 512>}, {pipeline_mode = #tpu.pipeline_mode<synchronous>, transform_indices = @transform_5, window_bounds = array<i64: 512, 512>}, {pipeline_mode = #tpu.pipeline_mode<synchronous>, transform_indices = @transform_6, window_bounds = array<i64: 1, 512>}, {pipeline_mode = #tpu.pipeline_mode<synchronous>, transform_indices = @transform_7, window_bounds = array<i64: 512, 128>}, {pipeline_mode = #tpu.pipeline_mode<synchronous>, transform_indices = @transform_8, window_bounds = array<i64: 1, 128>}, {transform_indices = @transform_9, window_bounds = array<i64: 8, 128>}]} {
    %c0 = arith.constant 0 : index
    %c0_0 = arith.constant 0 : index
    %0 = vector.load %arg1[%c0, %c0_0] : memref<8x128xbf16, #tpu.memory_space<vmem>>, vector<8x128xbf16>
    %c0_1 = arith.constant 0 : index
    %c0_2 = arith.constant 0 : index
    %1 = vector.load %arg2[%c0_1, %c0_2] : memref<128x512xbf16, #tpu.memory_space<vmem>>, vector<128x512xbf16>
    %cst = arith.constant dense<0.000000e+00> : vector<8x512xf32>
    %2 = tpu.matmul %0, %1, %cst {dimension_numbers = #tpu.dot_dimension_numbers<[1], [0], [0], [1], [0, 0, 1, 1], [], []>} : vector<8x128xbf16>, vector<128x512xbf16>, vector<8x512xf32> -> vector<8x512xf32>
    %c0_3 = arith.constant 0 : index
    %c0_4 = arith.constant 0 : index
    %3 = vector.load %arg3[%c0_3, %c0_4] : memref<1x512xf32, #tpu.memory_space<vmem>>, vector<1x512xf32>
    %4 = vector.broadcast %3 : vector<1x512xf32> to vector<8x512xf32>
    %5 = arith.addf %2, %4 : vector<8x512xf32>
    %cst_5 = arith.constant 0.000000e+00 : f32
    %6 = vector.broadcast %cst_5 : f32 to vector<8x512xf32>
    %7 = arith.maximumf %5, %6 : vector<8x512xf32>
    %8 = arith.truncf %7 : vector<8x512xf32> to vector<8x512xbf16>
    %c0_6 = arith.constant 0 : index
    %c0_7 = arith.constant 0 : index
    %9 = vector.load %arg4[%c0_6, %c0_7] : memref<512x512xbf16, #tpu.memory_space<vmem>>, vector<512x512xbf16>
    %cst_8 = arith.constant dense<0.000000e+00> : vector<8x512xf32>
    %10 = tpu.matmul %8, %9, %cst_8 {dimension_numbers = #tpu.dot_dimension_numbers<[1], [0], [0], [1], [0, 0, 1, 1], [], []>} : vector<8x512xbf16>, vector<512x512xbf16>, vector<8x512xf32> -> vector<8x512xf32>
    %c0_9 = arith.constant 0 : index
    %c0_10 = arith.constant 0 : index
    %11 = vector.load %arg5[%c0_9, %c0_10] : memref<1x512xf32, #tpu.memory_space<vmem>>, vector<1x512xf32>
    %12 = vector.broadcast %11 : vector<1x512xf32> to vector<8x512xf32>
    %13 = arith.addf %10, %12 : vector<8x512xf32>
    %cst_11 = arith.constant 0.000000e+00 : f32
    %14 = vector.broadcast %cst_11 : f32 to vector<8x512xf32>
    %15 = arith.maximumf %13, %14 : vector<8x512xf32>
    %16 = arith.truncf %15 : vector<8x512xf32> to vector<8x512xbf16>
    %c0_12 = arith.constant 0 : index
    %c0_13 = arith.constant 0 : index
    %17 = vector.load %arg6[%c0_12, %c0_13] : memref<512x512xbf16, #tpu.memory_space<vmem>>, vector<512x512xbf16>
    %cst_14 = arith.constant dense<0.000000e+00> : vector<8x512xf32>
    %18 = tpu.matmul %16, %17, %cst_14 {dimension_numbers = #tpu.dot_dimension_numbers<[1], [0], [0], [1], [0, 0, 1, 1], [], []>} : vector<8x512xbf16>, vector<512x512xbf16>, vector<8x512xf32> -> vector<8x512xf32>
    %c0_15 = arith.constant 0 : index
    %c0_16 = arith.constant 0 : index
    %19 = vector.load %arg7[%c0_15, %c0_16] : memref<1x512xf32, #tpu.memory_space<vmem>>, vector<1x512xf32>
    %20 = vector.broadcast %19 : vector<1x512xf32> to vector<8x512xf32>
    %21 = arith.addf %18, %20 : vector<8x512xf32>
    %cst_17 = arith.constant 0.000000e+00 : f32
    %22 = vector.broadcast %cst_17 : f32 to vector<8x512xf32>
    %23 = arith.maximumf %21, %22 : vector<8x512xf32>
    %24 = arith.truncf %23 : vector<8x512xf32> to vector<8x512xbf16>
    %c0_18 = arith.constant 0 : index
    %c0_19 = arith.constant 0 : index
    %25 = vector.load %arg8[%c0_18, %c0_19] : memref<512x128xbf16, #tpu.memory_space<vmem>>, vector<512x128xbf16>
    %cst_20 = arith.constant dense<0.000000e+00> : vector<8x128xf32>
    %26 = tpu.matmul %24, %25, %cst_20 {dimension_numbers = #tpu.dot_dimension_numbers<[1], [0], [0], [1], [0, 0, 1, 1], [], []>} : vector<8x512xbf16>, vector<512x128xbf16>, vector<8x128xf32> -> vector<8x128xf32>
    %c0_21 = arith.constant 0 : index
    %c0_22 = arith.constant 0 : index
    %27 = vector.load %arg9[%c0_21, %c0_22] : memref<1x128xf32, #tpu.memory_space<vmem>>, vector<1x128xf32>
    %28 = vector.broadcast %27 : vector<1x128xf32> to vector<8x128xf32>
    %29 = arith.addf %26, %28 : vector<8x128xf32>
    %c0_23 = arith.constant 0 : index
    %c0_24 = arith.constant 0 : index
    %30 = vector.load %arg10[%c0_23, %c0_24] : memref<8x128xf32, #tpu.memory_space<vmem>>, vector<8x128xf32>
    tpu.vector_store %arg10[%c0_23, %c0_24], %29 {strides = array<i32>} : memref<8x128xf32, #tpu.memory_space<vmem>>, vector<8x128xf32>,
    return
  }
  func.func @transform_0(%arg0: i32) -> (i32, i32) {
    %c0_i32 = arith.constant 0 : i32
    %c0_i32_0 = arith.constant 0 : i32
    return %arg0, %c0_i32 : i32, i32
  }
  func.func @transform_1(%arg0: i32) -> (i32, i32) {
    %c0_i32 = arith.constant 0 : i32
    %c0_i32_0 = arith.constant 0 : i32
    %c0_i32_1 = arith.constant 0 : i32
    return %c0_i32, %c0_i32_0 : i32, i32
  }
  func.func @transform_2(%arg0: i32) -> (i32, i32) {
    %c0_i32 = arith.constant 0 : i32
    %c0_i32_0 = arith.constant 0 : i32
    %c0_i32_1 = arith.constant 0 : i32
    return %c0_i32, %c0_i32_0 : i32, i32
  }
  func.func @transform_3(%arg0: i32) -> (i32, i32) {
    %c0_i32 = arith.constant 0 : i32
    %c0_i32_0 = arith.constant 0 : i32
    %c0_i32_1 = arith.constant 0 : i32
    return %c0_i32, %c0_i32_0 : i32, i32
  }
  func.func @transform_4(%arg0: i32) -> (i32, i32) {
    %c0_i32 = arith.constant 0 : i32
    %c0_i32_0 = arith.constant 0 : i32
    %c0_i32_1 = arith.constant 0 : i32
    return %c0_i32, %c0_i32_0 : i32, i32
  }
  func.func @transform_5(%arg0: i32) -> (i32, i32) {
    %c0_i32 = arith.constant 0 : i32
    %c0_i32_0 = arith.constant 0 : i32
    %c0_i32_1 = arith.constant 0 : i32
    return %c0_i32, %c0_i32_0 : i32, i32
  }
  func.func @transform_6(%arg0: i32) -> (i32, i32) {
    %c0_i32 = arith.constant 0 : i32
    %c0_i32_0 = arith.constant 0 : i32
    %c0_i32_1 = arith.constant 0 : i32
    return %c0_i32, %c0_i32_0 : i32, i32
  }
  func.func @transform_7(%arg0: i32) -> (i32, i32) {
    %c0_i32 = arith.constant 0 : i32
    %c0_i32_0 = arith.constant 0 : i32
    %c0_i32_1 = arith.constant 0 : i32
    return %c0_i32, %c0_i32_0 : i32, i32
  }
  func.func @transform_8(%arg0: i32) -> (i32, i32) {
    %c0_i32 = arith.constant 0 : i32
    %c0_i32_0 = arith.constant 0 : i32
    %c0_i32_1 = arith.constant 0 : i32
    return %c0_i32, %c0_i32_0 : i32, i32
  }
  func.func @transform_9(%arg0: i32) -> (i32, i32) {
    %c0_i32 = arith.constant 0 : i32
    %c0_i32_0 = arith.constant 0 : i32
    return %arg0, %c0_i32 : i32, i32
  }
}

</mosaic_0001>

<llo_original>
// kernel: mlp_forward.1
$region0: #{mlp_forward.1}
  #allocation0 [shape = 'u32[]', space=smem, size = 0x4, offset = 0x4, fixed_abs, tag = 'smem constant byte address 0x4 - core index']
  #allocation1 [shape = 'u32[144,128]{1,0:T(1,128)}', space=vmem, size = 0x12000, scoped, tag = 'internal scratch']
  %s0 = inlined_call_operand.vmem [shape: bf16[8,128], index: 0, kind: input, shape index: {}]
  %s1 = inlined_call_operand.hbm [shape: bf16[128,512], index: 1, kind: input, shape index: {}]
  %s2 = inlined_call_operand.vmem [shape: f32[1,512], index: 2, kind: input, shape index: {}]
  %s3 = inlined_call_operand.hbm [shape: bf16[512,512], index: 3, kind: input, shape index: {}]
  %s4 = inlined_call_operand.vmem [shape: f32[1,512], index: 4, kind: input, shape index: {}]
  %s5 = inlined_call_operand.hbm [shape: bf16[512,512], index: 5, kind: input, shape index: {}]
  %s6 = inlined_call_operand.vmem [shape: f32[1,512], index: 6, kind: input, shape index: {}]
  %s7 = inlined_call_operand.hbm [shape: bf16[512,128], index: 7, kind: input, shape index: {}]
  %s8 = inlined_call_operand.vmem [shape: f32[1,128], index: 8, kind: input, shape index: {}]
  %s9 = inlined_call_operand.vmem [shape: f32[8,128], index: 9, kind: output, shape index: {}]
  %s10 = sld [smem:[#allocation0]]
  $region62: #{mlp_forward.1} parent=0
    _
  %s12 = ssub.s32 1, %s10
  %s13 = scalar_select 0, %s12, %s10
  $region1: #{mlp_forward.1} parent=0
    #allocation2 [shape = 'u8[131072]{0}', space=vmem, size = 0x20000, scoped, tag = 'input window, operand 1, single buffered']
    #allocation3 [shape = 's32[1]{0}', space=sflag, size = 0x4, scoped, tag = 'scoped memory for mlp_forward.1']
    #allocation4 [shape = 'u8[524288]{0}', space=vmem, size = 0x80000, scoped, tag = 'input window, operand 3, single buffered']
    #allocation5 [shape = 's32[1]{0}', space=sflag, size = 0x4, scoped, tag = 'scoped memory for mlp_forward.1']
    #allocation6 [shape = 'u8[524288]{0}', space=vmem, size = 0x80000, scoped, tag = 'input window, operand 5, single buffered']
    #allocation7 [shape = 'u8[131072]{0}', space=vmem, size = 0x20000, scoped, tag = 'input window, operand 7, single buffered']
    #allocation8 [shape = 's32[1]{0}', space=sflag, size = 0x4, scoped, tag = 'scoped memory for mlp_forward.1']
    %14 = vsyncpa [#allocation3], 0
    %15 = vsyncpa [#allocation5], 0
    %16 = vsyncpa [#allocation8], 0
    // Predicated region
    $region2: #{mlp_forward.1} parent=1 // pred_check
      _
    $region3: #{mlp_forward.1} parent=1 // pred_check_branch
      %18 = sbr.rel (0) target = $region5
    $region4: #{mlp_forward.1} parent=1 // pred_region
      _
    $region5: #{mlp_forward.1} parent=1 // pred_fallthru
      _
    // Predicated region
    $region6: #{mlp_forward.1} parent=1 // pred_check
      _
    $region7: #{mlp_forward.1} parent=1 // pred_check_branch
      %20 = sbr.rel (0) target = $region9
    $region8: #{mlp_forward.1} parent=1 // pred_region
      %s22 = ssub.s32 4096, 4096
      %23 = vsyncadd [#allocation3], %s22
      %s24 = sshll.u32 [#allocation2], 4
      %s25 = int_to_ptr.vmem [resolvable:$true] %s24
      %30 = dma.hbm_to_vmem [thread:$0]  %s1, 4096, %s25, [#allocation3], 256, 256, 16
    $region9: #{mlp_forward.1} parent=1 // pred_fallthru
      _
    // Predicated region
    $region10: #{mlp_forward.1} parent=1 // pred_check
      _
    $region11: #{mlp_forward.1} parent=1 // pred_check_branch
      %32 = sbr.rel (0) target = $region13
    $region12: #{mlp_forward.1} parent=1 // pred_region
      _
    $region13: #{mlp_forward.1} parent=1 // pred_fallthru
      _
    // Predicated region
    $region14: #{mlp_forward.1} parent=1 // pred_check
      _
    $region15: #{mlp_forward.1} parent=1 // pred_check_branch
      %34 = sbr.rel (0) target = $region17
    $region16: #{mlp_forward.1} parent=1 // pred_region
      %s36 = ssub.s32 16384, 16384
      %37 = vsyncadd [#allocation5], %s36
      %s38 = sshll.u32 [#allocation4], 4
      %s39 = int_to_ptr.vmem [resolvable:$true] %s38
      %44 = dma.hbm_to_vmem [thread:$0]  %s3, 16384, %s39, [#allocation5], 256, 256, 16
    $region17: #{mlp_forward.1} parent=1 // pred_fallthru
      _
    // Predicated region
    $region18: #{mlp_forward.1} parent=1 // pred_check
      _
    $region19: #{mlp_forward.1} parent=1 // pred_check_branch
      %46 = sbr.rel (0) target = $region21
    $region20: #{mlp_forward.1} parent=1 // pred_region
      _
    $region21: #{mlp_forward.1} parent=1 // pred_fallthru
      _
    // Predicated region
    $region22: #{mlp_forward.1} parent=1 // pred_check
      _
    $region23: #{mlp_forward.1} parent=1 // pred_check_branch
      %48 = sbr.rel (0) target = $region25
    $region24: #{mlp_forward.1} parent=1 // pred_region
      %s50 = ssub.s32 16384, 16384
      %51 = vsyncadd [#allocation5], %s50
      %s52 = sshll.u32 [#allocation6], 4
      %s53 = int_to_ptr.vmem [resolvable:$true] %s52
      %58 = dma.hbm_to_vmem [thread:$0]  %s5, 16384, %s53, [#allocation5], 256, 256, 16
    $region25: #{mlp_forward.1} parent=1 // pred_fallthru
      _
    // Predicated region
    $region26: #{mlp_forward.1} parent=1 // pred_check
      _
    $region27: #{mlp_forward.1} parent=1 // pred_check_branch
      %60 = sbr.rel (0) target = $region29
    $region28: #{mlp_forward.1} parent=1 // pred_region
      _
    $region29: #{mlp_forward.1} parent=1 // pred_fallthru
      _
    // Predicated region
    $region30: #{mlp_forward.1} parent=1 // pred_check
      _
    $region31: #{mlp_forward.1} parent=1 // pred_check_branch
      %62 = sbr.rel (0) target = $region33
    $region32: #{mlp_forward.1} parent=1 // pred_region
      %s64 = ssub.s32 4096, 4096
      %65 = vsyncadd [#allocation8], %s64
      %s66 = sshll.u32 [#allocation7], 4
      %s67 = int_to_ptr.vmem [resolvable:$true] %s66
      %72 = dma.hbm_to_vmem [thread:$0]  %s7, 4096, %s67, [#allocation8], 64, 64, 4
    $region33: #{mlp_forward.1} parent=1 // pred_fallthru
      _
    // Predicated region
    $region34: #{mlp_forward.1} parent=1 // pred_check
      _
    $region35: #{mlp_forward.1} parent=1 // pred_check_branch
      %74 = sbr.rel (0) target = $region37
    $region36: #{mlp_forward.1} parent=1 // pred_region
      _
    $region37: #{mlp_forward.1} parent=1 // pred_fallthru
      _
    // Predicated region
    $region38: #{mlp_forward.1} parent=1 // pred_check
      _
    $region39: #{mlp_forward.1} parent=1 // pred_check_branch
      %76 = sbr.rel (0) target = $region41
    $region40: #{mlp_forward.1} parent=1 // pred_region
      %77 = dma.done [#allocation3], 4096
    $region41: #{mlp_forward.1} parent=1 // pred_fallthru
      _
    // Predicated region
    $region42: #{mlp_forward.1} parent=1 // pred_check
      _
    $region43: #{mlp_forward.1} parent=1 // pred_check_branch
      %79 = sbr.rel (0) target = $region45
    $region44: #{mlp_forward.1} parent=1 // pred_region
      %80 = dma.done [#allocation5], 16384
    $region45: #{mlp_forward.1} parent=1 // pred_fallthru
      _
    // Predicated region
    $region46: #{mlp_forward.1} parent=1 // pred_check
      _
    $region47: #{mlp_forward.1} parent=1 // pred_check_branch
      %82 = sbr.rel (0) target = $region49
    $region48: #{mlp_forward.1} parent=1 // pred_region
      %83 = dma.done [#allocation5], 16384
    $region49: #{mlp_forward.1} parent=1 // pred_fallthru
      _
    // Predicated region
    $region50: #{mlp_forward.1} parent=1 // pred_check
      _
    $region51: #{mlp_forward.1} parent=1 // pred_check_branch
      %85 = sbr.rel (0) target = $region53
    $region52: #{mlp_forward.1} parent=1 // pred_region
      %86 = dma.done [#allocation8], 4096
    $region53: #{mlp_forward.1} parent=1 // pred_fallthru
      _
    %v88 = vld [vmem:[%s0] sm:$0xf]
    %v89 = vld [vmem:[#allocation2] sm:$0xff]
    %v90 = vld [vmem:[#allocation2 + $0x8] sm:$0xff]
    %v91 = vld [vmem:[#allocation2 + $0x10] sm:$0xff]
    %v92 = vld [vmem:[#allocation2 + $0x18] sm:$0xff]
    %v93 = vld [vmem:[#allocation2 + $0x20] sm:$0xff]
    %v94 = vld [vmem:[#allocation2 + $0x28] sm:$0xff]
    %v95 = vld [vmem:[#allocation2 + $0x30] sm:$0xff]
    %v96 = vld [vmem:[#allocation2 + $0x38] sm:$0xff]
    %v97 = vld [vmem:[#allocation2 + $0x40] sm:$0xff]
    %v98 = vld [vmem:[#allocation2 + $0x48] sm:$0xff]
    %v99 = vld [vmem:[#allocation2 + $0x50] sm:$0xff]
    %v100 = vld [vmem:[#allocation2 + $0x58] sm:$0xff]
    %v101 = vld [vmem:[#allocation2 + $0x60] sm:$0xff]
    %v102 = vld [vmem:[#allocation2 + $0x68] sm:$0xff]
    %v103 = vld [vmem:[#allocation2 + $0x70] sm:$0xff]
    %v104 = vld [vmem:[#allocation2 + $0x78] sm:$0xff]
    %v105 = vld [vmem:[#allocation2 + $0x80] sm:$0xff]
    %v106 = vld [vmem:[#allocation2 + $0x88] sm:$0xff]
    %v107 = vld [vmem:[#allocation2 + $0x90] sm:$0xff]
    %v108 = vld [vmem:[#allocation2 + $0x98] sm:$0xff]
    %v109 = vld [vmem:[#allocation2 + $0xa0] sm:$0xff]
    %v110 = vld [vmem:[#allocation2 + $0xa8] sm:$0xff]
    %v111 = vld [vmem:[#allocation2 + $0xb0] sm:$0xff]
    %v112 = vld [vmem:[#allocation2 + $0xb8] sm:$0xff]
    %v113 = vld [vmem:[#allocation2 + $0xc0] sm:$0xff]
    %v114 = vld [vmem:[#allocation2 + $0xc8] sm:$0xff]
    %v115 = vld [vmem:[#allocation2 + $0xd0] sm:$0xff]
    %v116 = vld [vmem:[#allocation2 + $0xd8] sm:$0xff]
    %v117 = vld [vmem:[#allocation2 + $0xe0] sm:$0xff]
    %v118 = vld [vmem:[#allocation2 + $0xe8] sm:$0xff]
    %v119 = vld [vmem:[#allocation2 + $0xf0] sm:$0xff]
    %v120 = vld [vmem:[#allocation2 + $0xf8] sm:$0xff]
    %v121 = vld [vmem:[%s2] sm:$0xf]
    %v123 = vlaneseq
    %v124 = vshrl.u32 %v123, 7
    %v125 = vsub.s32 0, %v124
    %v126 = vrot.slane %v121, %v125
    %v127 = vlaneseq
    %v128 = vshrl.u32 %v127, 7
    %v129 = vsub.s32 1, %v128
    %v130 = vrot.slane %v121, %v129
    %v131 = vlaneseq
    %v132 = vshrl.u32 %v131, 7
    %v133 = vsub.s32 2, %v132
    %v134 = vrot.slane %v121, %v133
    %v135 = vlaneseq
    %v136 = vshrl.u32 %v135, 7
    %v137 = vsub.s32 3, %v136
    %v138 = vrot.slane %v121, %v137
    %v175 = vunpack.c.l.b16 %v89
    %v176 = vunpack.c.h.b16 %v89
    %v177 = vunpack.c.l.b16 %v90
    %v178 = vunpack.c.h.b16 %v90
    %v179 = vunpack.c.l.b16 %v91
    %v180 = vunpack.c.h.b16 %v91
    %v181 = vunpack.c.l.b16 %v92
    %v182 = vunpack.c.h.b16 %v92
    %v183 = vunpack.c.l.b16 %v93
    %v184 = vunpack.c.h.b16 %v93
    %v185 = vunpack.c.l.b16 %v94
    %v186 = vunpack.c.h.b16 %v94
    %v187 = vunpack.c.l.b16 %v95
    %v188 = vunpack.c.h.b16 %v95
    %v189 = vunpack.c.l.b16 %v96
    %v190 = vunpack.c.h.b16 %v96
    %v191 = vunpack.c.l.b16 %v97
    %v192 = vunpack.c.h.b16 %v97
    %v193 = vunpack.c.l.b16 %v98
    %v194 = vunpack.c.h.b16 %v98
    %v195 = vunpack.c.l.b16 %v99
    %v196 = vunpack.c.h.b16 %v99
    %v197 = vunpack.c.l.b16 %v100
    %v198 = vunpack.c.h.b16 %v100
    %v199 = vunpack.c.l.b16 %v101
    %v200 = vunpack.c.h.b16 %v101
    %v201 = vunpack.c.l.b16 %v102
    %v202 = vunpack.c.h.b16 %v102
    %v203 = vunpack.c.l.b16 %v103
    %v204 = vunpack.c.h.b16 %v103
    %v205 = vunpack.c.l.b16 %v104
    %v206 = vunpack.c.h.b16 %v104
    %v207 = vunpack.c.l.b16 %v105
    %v208 = vunpack.c.h.b16 %v105
    %v209 = vunpack.c.l.b16 %v106
    %v210 = vunpack.c.h.b16 %v106
    %v211 = vunpack.c.l.b16 %v107
    %v212 = vunpack.c.h.b16 %v107
    %v213 = vunpack.c.l.b16 %v108
    %v214 = vunpack.c.h.b16 %v108
    %v215 = vunpack.c.l.b16 %v109
    %v216 = vunpack.c.h.b16 %v109
    %v217 = vunpack.c.l.b16 %v110
    %v218 = vunpack.c.h.b16 %v110
    %v219 = vunpack.c.l.b16 %v111
    %v220 = vunpack.c.h.b16 %v111
    %v221 = vunpack.c.l.b16 %v112
    %v222 = vunpack.c.h.b16 %v112
    %v223 = vunpack.c.l.b16 %v113
    %v224 = vunpack.c.h.b16 %v113
    %v225 = vunpack.c.l.b16 %v114
    %v226 = vunpack.c.h.b16 %v114
    %v227 = vunpack.c.l.b16 %v115
    %v228 = vunpack.c.h.b16 %v115
    %v229 = vunpack.c.l.b16 %v116
    %v230 = vunpack.c.h.b16 %v116
    %v231 = vunpack.c.l.b16 %v117
    %v232 = vunpack.c.h.b16 %v117
    %v233 = vunpack.c.l.b16 %v118
    %v234 = vunpack.c.h.b16 %v118
    %v235 = vunpack.c.l.b16 %v119
    %v236 = vunpack.c.h.b16 %v119
    %v237 = vunpack.c.l.b16 %v120
    %v238 = vunpack.c.h.b16 %v120
    %v239 = vpack.c.b16 %v179, %v175
    %v240 = vpack.c.b16 %v180, %v176
    %v241 = vpack.c.b16 %v181, %v177
    %v242 = vpack.c.b16 %v182, %v178
    %v243 = vpack.c.b16 %v187, %v183
    %v244 = vpack.c.b16 %v188, %v184
    %v245 = vpack.c.b16 %v189, %v185
    %v246 = vpack.c.b16 %v190, %v186
    %v247 = vpack.c.b16 %v195, %v191
    %v248 = vpack.c.b16 %v196, %v192
    %v249 = vpack.c.b16 %v197, %v193
    %v250 = vpack.c.b16 %v198, %v194
    %v251 = vpack.c.b16 %v203, %v199
    %v252 = vpack.c.b16 %v204, %v200
    %v253 = vpack.c.b16 %v205, %v201
    %v254 = vpack.c.b16 %v206, %v202
    %v255 = vpack.c.b16 %v211, %v207
    %v256 = vpack.c.b16 %v212, %v208
    %v257 = vpack.c.b16 %v213, %v209
    %v258 = vpack.c.b16 %v214, %v210
    %v259 = vpack.c.b16 %v219, %v215
    %v260 = vpack.c.b16 %v220, %v216
    %v261 = vpack.c.b16 %v221, %v217
    %v262 = vpack.c.b16 %v222, %v218
    %v263 = vpack.c.b16 %v227, %v223
    %v264 = vpack.c.b16 %v228, %v224
    %v265 = vpack.c.b16 %v229, %v225
    %v266 = vpack.c.b16 %v230, %v226
    %v267 = vpack.c.b16 %v235, %v231
    %v268 = vpack.c.b16 %v236, %v232
    %v269 = vpack.c.b16 %v237, %v233
    %v270 = vpack.c.b16 %v238, %v234
    %303 = vmatprep.subr.bf16.mxu0 %v240
    %304 = vmatpush1.bf16.msra.mxu0 %v239
    %305 = vmatprep.subr.bf16.mxu0 %v244
    %306 = vmatpush1.bf16.msra.mxu0 %v243
    %307 = vmatprep.subr.bf16.mxu0 %v248
    %308 = vmatpush1.bf16.msra.mxu0 %v247
    %309 = vmatprep.subr.bf16.mxu0 %v252
    %310 = vmatpush1.bf16.msra.mxu0 %v251
    %311 = vmatprep.subr.bf16.mxu0 %v256
    %312 = vmatpush1.bf16.msra.mxu0 %v255
    %313 = vmatprep.subr.bf16.mxu0 %v260
    %314 = vmatpush1.bf16.msra.mxu0 %v259
    %315 = vmatprep.subr.bf16.mxu0 %v264
    %316 = vmatpush1.bf16.msra.mxu0 %v263
    %317 = vmatprep.subr.bf16.mxu0 %v268
    %318 = vmatpush1.bf16.msra.mxu0 %v267
    %319 = vmatprep.subr.bf16.mxu0 0
    %320 = vmatpush1.bf16.msra.mxu0 0
    %321 = vmatprep.subr.bf16.mxu0 0
    %322 = vmatpush1.bf16.msra.mxu0 0
    %323 = vmatprep.subr.bf16.mxu0 0
    %324 = vmatpush1.bf16.msra.mxu0 0
    %325 = vmatprep.subr.bf16.mxu0 0
    %326 = vmatpush1.bf16.msra.mxu0 0
    %327 = vmatprep.subr.bf16.mxu0 0
    %328 = vmatpush1.bf16.msra.mxu0 0
    %329 = vmatprep.subr.bf16.mxu0 0
    %330 = vmatpush1.bf16.msra.mxu0 0
    %331 = vmatprep.subr.bf16.mxu0 0
    %332 = vmatpush1.bf16.msra.mxu0 0
    %333 = vmatprep.subr.bf16.mxu0 0
    %334 = vmatpush1.bf16.msra.mxu0 0
    %335 = vmatprep.mubr.bf16.mxu0 0
    %336 = vmatmul.mubr.bf16.gmra.mrb[0].mxu0 %v88
    %v337 = vpop.f32.mrb[0].mxu0
    %v338 = vadd.f32 %v126, %v337
    %v339 = vpop.f32.mrb[0].mxu0
    %v340 = vadd.f32 %v130, %v339
    %v341 = vpop.f32.mrb[0].mxu0
    %v342 = vpop.f32.mrb[0].mxu0
    %343 = vdwg.mxu0
    %344 = vmatprep.subr.bf16.mxu0 %v242
    %345 = vmatpush1.bf16.msra.mxu0 %v241
    %346 = vmatprep.subr.bf16.mxu0 %v246
    %347 = vmatpush1.bf16.msra.mxu0 %v245
    %348 = vmatprep.subr.bf16.mxu0 %v250
    %349 = vmatpush1.bf16.msra.mxu0 %v249
    %350 = vmatprep.subr.bf16.mxu0 %v254
    %351 = vmatpush1.bf16.msra.mxu0 %v253
    %352 = vmatprep.subr.bf16.mxu0 %v258
    %353 = vmatpush1.bf16.msra.mxu0 %v257
    %354 = vmatprep.subr.bf16.mxu0 %v262
    %355 = vmatpush1.bf16.msra.mxu0 %v261
    %356 = vmatprep.subr.bf16.mxu0 %v266
    %357 = vmatpush1.bf16.msra.mxu0 %v265
    %358 = vmatprep.subr.bf16.mxu0 %v270
    %359 = vmatpush1.bf16.msra.mxu0 %v269
    %360 = vmatprep.subr.bf16.mxu0 0
    %361 = vmatpush1.bf16.msra.mxu0 0
    %362 = vmatprep.subr.bf16.mxu0 0
    %363 = vmatpush1.bf16.msra.mxu0 0
    %364 = vmatprep.subr.bf16.mxu0 0
    %365 = vmatpush1.bf16.msra.mxu0 0
    %366 = vmatprep.subr.bf16.mxu0 0
    %367 = vmatpush1.bf16.msra.mxu0 0
    %368 = vmatprep.subr.bf16.mxu0 0
    %369 = vmatpush1.bf16.msra.mxu0 0
    %370 = vmatprep.subr.bf16.mxu0 0
    %371 = vmatpush1.bf16.msra.mxu0 0
    %372 = vmatprep.subr.bf16.mxu0 0
    %373 = vmatpush1.bf16.msra.mxu0 0
    %374 = vmatprep.subr.bf16.mxu0 0
    %375 = vmatpush1.bf16.msra.mxu0 0
    %376 = vmatprep.mubr.bf16.mxu0 0
    %377 = vmatmul.mubr.bf16.gmra.mrb[0].mxu0 %v88
    %v378 = vpop.f32.mrb[0].mxu0
    %v379 = vadd.f32 %v134, %v378
    %v380 = vpop.f32.mrb[0].mxu0
    %v381 = vadd.f32 %v138, %v380
    %v382 = vpop.f32.mrb[0].mxu0
    %v383 = vpop.f32.mrb[0].mxu0
    %384 = vdwg.mxu0
    %v385 = vmax.f32 %v338, 0.0
    %v386 = vmax.f32 %v340, 0.0
    %v387 = vmax.f32 %v379, 0.0
    %v388 = vmax.f32 %v381, 0.0
    %v389 = vpack.c.bf16 %v385, %v385
    %v390 = vpack.c.bf16 %v386, %v386
    %v391 = vpack.c.bf16 %v387, %v387
    %v392 = vpack.c.bf16 %v388, %v388
    %v393 = vld [vmem:[#allocation4] sm:$0xff]
    %v394 = vld [vmem:[#allocation4 + $0x8] sm:$0xff]
    %v395 = vld [vmem:[#allocation4 + $0x10] sm:$0xff]
    %v396 = vld [vmem:[#allocation4 + $0x18] sm:$0xff]
    %v397 = vld [vmem:[#allocation4 + $0x20] sm:$0xff]
    %v398 = vld [vmem:[#allocation4 + $0x28] sm:$0xff]
    %v399 = vld [vmem:[#allocation4 + $0x30] sm:$0xff]
    %v400 = vld [vmem:[#allocation4 + $0x38] sm:$0xff]
    %v401 = vld [vmem:[#allocation4 + $0x40] sm:$0xff]
    %v402 = vld [vmem:[#allocation4 + $0x48] sm:$0xff]
    %v403 = vld [vmem:[#allocation4 + $0x50] sm:$0xff]
    %v404 = vld [vmem:[#allocation4 + $0x58] sm:$0xff]
    %v405 = vld [vmem:[#allocation4 + $0x60] sm:$0xff]
    %v406 = vld [vmem:[#allocation4 + $0x68] sm:$0xff]
    %v407 = vld [vmem:[#allocation4 + $0x70] sm:$0xff]
    %v408 = vld [vmem:[#allocation4 + $0x78] sm:$0xff]
    %v409 = vld [vmem:[#allocation4 + $0x80] sm:$0xff]
    %v410 = vld [vmem:[#allocation4 + $0x88] sm:$0xff]
    %v411 = vld [vmem:[#allocation4 + $0x90] sm:$0xff]
    %v412 = vld [vmem:[#allocation4 + $0x98] sm:$0xff]
    %v413 = vld [vmem:[#allocation4 + $0xa0] sm:$0xff]
    %v414 = vld [vmem:[#allocation4 + $0xa8] sm:$0xff]
    %v415 = vld [vmem:[#allocation4 + $0xb0] sm:$0xff]
    %v416 = vld [vmem:[#allocation4 + $0xb8] sm:$0xff]
    %v417 = vld [vmem:[#allocation4 + $0xc0] sm:$0xff]
    %v418 = vld [vmem:[#allocation4 + $0xc8] sm:$0xff]
    %v419 = vld [vmem:[#allocation4 + $0xd0] sm:$0xff]
    %v420 = vld [vmem:[#allocation4 + $0xd8] sm:$0xff]
    %v421 = vld [vmem:[#allocation4 + $0xe0] sm:$0xff]
    %v422 = vld [vmem:[#allocation4 + $0xe8] sm:$0xff]
    %v423 = vld [vmem:[#allocation4 + $0xf0] sm:$0xff]
    %v424 = vld [vmem:[#allocation4 + $0xf8] sm:$0xff]
    %v425 = vld [vmem:[#allocation4 + $0x100] sm:$0xff]
    %v426 = vld [vmem:[#allocation4 + $0x108] sm:$0xff]
    %v427 = vld [vmem:[#allocation4 + $0x110] sm:$0xff]
    %v428 = vld [vmem:[#allocation4 + $0x118] sm:$0xff]
    %v429 = vld [vmem:[#allocation4 + $0x120] sm:$0xff]
    %v430 = vld [vmem:[#allocation4 + $0x128] sm:$0xff]
    %v431 = vld [vmem:[#allocation4 + $0x130] sm:$0xff]
    %v432 = vld [vmem:[#allocation4 + $0x138] sm:$0xff]
    %v433 = vld [vmem:[#allocation4 + $0x140] sm:$0xff]
    %v434 = vld [vmem:[#allocation4 + $0x148] sm:$0xff]
    %v435 = vld [vmem:[#allocation4 + $0x150] sm:$0xff]
    %v436 = vld [vmem:[#allocation4 + $0x158] sm:$0xff]
    %v437 = vld [vmem:[#allocation4 + $0x160] sm:$0xff]
    %v438 = vld [vmem:[#allocation4 + $0x168] sm:$0xff]
    %v439 = vld [vmem:[#allocation4 + $0x170] sm:$0xff]
    %v440 = vld [vmem:[#allocation4 + $0x178] sm:$0xff]
    %v441 = vld [vmem:[#allocation4 + $0x180] sm:$0xff]
    %v442 = vld [vmem:[#allocation4 + $0x188] sm:$0xff]
    %v443 = vld [vmem:[#allocation4 + $0x190] sm:$0xff]
    %v444 = vld [vmem:[#allocation4 + $0x198] sm:$0xff]
    %v445 = vld [vmem:[#allocation4 + $0x1a0] sm:$0xff]
    %v446 = vld [vmem:[#allocation4 + $0x1a8] sm:$0xff]
    %v447 = vld [vmem:[#allocation4 + $0x1b0] sm:$0xff]
    %v448 = vld [vmem:[#allocation4 + $0x1b8] sm:$0xff]
    %v449 = vld [vmem:[#allocation4 + $0x1c0] sm:$0xff]
    %v450 = vld [vmem:[#allocation4 + $0x1c8] sm:$0xff]
    %v451 = vld [vmem:[#allocation4 + $0x1d0] sm:$0xff]
    %v452 = vld [vmem:[#allocation4 + $0x1d8] sm:$0xff]
    %v453 = vld [vmem:[#allocation4 + $0x1e0] sm:$0xff]
    %v454 = vld [vmem:[#allocation4 + $0x1e8] sm:$0xff]
    %v455 = vld [vmem:[#allocation4 + $0x1f0] sm:$0xff]
    %v456 = vld [vmem:[#allocation4 + $0x1f8] sm:$0xff]
    %v457 = vld [vmem:[#allocation4 + $0x200] sm:$0xff]
    %v458 = vld [vmem:[#allocation4 + $0x208] sm:$0xff]
    %v459 = vld [vmem:[#allocation4 + $0x210] sm:$0xff]
    %v460 = vld [vmem:[#allocation4 + $0x218] sm:$0xff]
    %v461 = vld [vmem:[#allocation4 + $0x220] sm:$0xff]
    %v462 = vld [vmem:[#allocation4 + $0x228] sm:$0xff]
    %v463 = vld [vmem:[#allocation4 + $0x230] sm:$0xff]
    %v464 = vld [vmem:[#allocation4 + $0x238] sm:$0xff]
    %v465 = vld [vmem:[#allocation4 + $0x240] sm:$0xff]
    %v466 = vld [vmem:[#allocation4 + $0x248] sm:$0xff]
    %v467 = vld [vmem:[#allocation4 + $0x250] sm:$0xff]
    %v468 = vld [vmem:[#allocation4 + $0x258] sm:$0xff]
    %v469 = vld [vmem:[#allocation4 + $0x260] sm:$0xff]
    %v470 = vld [vmem:[#allocation4 + $0x268] sm:$0xff]
    %v471 = vld [vmem:[#allocation4 + $0x270] sm:$0xff]
    %v472 = vld [vmem:[#allocation4 + $0x278] sm:$0xff]
    %v473 = vld [vmem:[#allocation4 + $0x280] sm:$0xff]
    %v474 = vld [vmem:[#allocation4 + $0x288] sm:$0xff]
    %v475 = vld [vmem:[#allocation4 + $0x290] sm:$0xff]
    %v476 = vld [vmem:[#allocation4 + $0x298] sm:$0xff]
    %v477 = vld [vmem:[#allocation4 + $0x2a0] sm:$0xff]
    %v478 = vld [vmem:[#allocation4 + $0x2a8] sm:$0xff]
    %v479 = vld [vmem:[#allocation4 + $0x2b0] sm:$0xff]
    %v480 = vld [vmem:[#allocation4 + $0x2b8] sm:$0xff]
    %v481 = vld [vmem:[#allocation4 + $0x2c0] sm:$0xff]
    %v482 = vld [vmem:[#allocation4 + $0x2c8] sm:$0xff]
    %v483 = vld [vmem:[#allocation4 + $0x2d0] sm:$0xff]
    %v484 = vld [vmem:[#allocation4 + $0x2d8] sm:$0xff]
    %v485 = vld [vmem:[#allocation4 + $0x2e0] sm:$0xff]
    %v486 = vld [vmem:[#allocation4 + $0x2e8] sm:$0xff]
    %v487 = vld [vmem:[#allocation4 + $0x2f0] sm:$0xff]
    %v488 = vld [vmem:[#allocation4 + $0x2f8] sm:$0xff]
    %v489 = vld [vmem:[#allocation4 + $0x300] sm:$0xff]
    %v490 = vld [vmem:[#allocation4 + $0x308] sm:$0xff]
    %v491 = vld [vmem:[#allocation4 + $0x310] sm:$0xff]
    %v492 = vld [vmem:[#allocation4 + $0x318] sm:$0xff]
    %v493 = vld [vmem:[#allocation4 + $0x320] sm:$0xff]
    %v494 = vld [vmem:[#allocation4 + $0x328] sm:$0xff]
    %v495 = vld [vmem:[#allocation4 + $0x330] sm:$0xff]
    %v496 = vld [vmem:[#allocation4 + $0x338] sm:$0xff]
    %v497 = vld [vmem:[#allocation4 + $0x340] sm:$0xff]
    %v498 = vld [vmem:[#allocation4 + $0x348] sm:$0xff]
    %v499 = vld [vmem:[#allocation4 + $0x350] sm:$0xff]
    %v500 = vld [vmem:[#allocation4 + $0x358] sm:$0xff]
    %v501 = vld [vmem:[#allocation4 + $0x360] sm:$0xff]
    %v502 = vld [vmem:[#allocation4 + $0x368] sm:$0xff]
    %v503 = vld [vmem:[#allocation4 + $0x370] sm:$0xff]
    %v504 = vld [vmem:[#allocation4 + $0x378] sm:$0xff]
    %v505 = vld [vmem:[#allocation4 + $0x380] sm:$0xff]
    %v506 = vld [vmem:[#allocation4 + $0x388] sm:$0xff]
    %v507 = vld [vmem:[#allocation4 + $0x390] sm:$0xff]
    %v508 = vld [vmem:[#allocation4 + $0x398] sm:$0xff]
    %v509 = vld [vmem:[#allocation4 + $0x3a0] sm:$0xff]
    %v510 = vld [vmem:[#allocation4 + $0x3a8] sm:$0xff]
    %v511 = vld [vmem:[#allocation4 + $0x3b0] sm:$0xff]
    %v512 = vld [vmem:[#allocation4 + $0x3b8] sm:$0xff]
    %v513 = vld [vmem:[#allocation4 + $0x3c0] sm:$0xff]
    %v514 = vld [vmem:[#allocation4 + $0x3c8] sm:$0xff]
    %v515 = vld [vmem:[#allocation4 + $0x3d0] sm:$0xff]
    %v516 = vld [vmem:[#allocation4 + $0x3d8] sm:$0xff]
    %v517 = vld [vmem:[#allocation4 + $0x3e0] sm:$0xff]
    %v518 = vld [vmem:[#allocation4 + $0x3e8] sm:$0xff]
    %v519 = vld [vmem:[#allocation4 + $0x3f0] sm:$0xff]
    %v520 = vld [vmem:[#allocation4 + $0x3f8] sm:$0xff]
    %v521 = vld [vmem:[%s4] sm:$0xf]
    %v523 = vlaneseq
    %v524 = vshrl.u32 %v523, 7
    %v525 = vsub.s32 0, %v524
    %v526 = vrot.slane %v521, %v525
    %v527 = vlaneseq
    %v528 = vshrl.u32 %v527, 7
    %v529 = vsub.s32 1, %v528
    %v530 = vrot.slane %v521, %v529
    %v531 = vlaneseq
    %v532 = vshrl.u32 %v531, 7
    %v533 = vsub.s32 2, %v532
    %v534 = vrot.slane %v521, %v533
    %v535 = vlaneseq
    %v536 = vshrl.u32 %v535, 7
    %v537 = vsub.s32 3, %v536
    %v538 = vrot.slane %v521, %v537
    %v671 = vunpack.c.l.b16 %v393
    %v672 = vunpack.c.h.b16 %v393
    %v673 = vunpack.c.l.b16 %v394
    %v674 = vunpack.c.h.b16 %v394
    %v675 = vunpack.c.l.b16 %v395
    %v676 = vunpack.c.h.b16 %v395
    %v677 = vunpack.c.l.b16 %v396
    %v678 = vunpack.c.h.b16 %v396
    %v679 = vunpack.c.l.b16 %v397
    %v680 = vunpack.c.h.b16 %v397
    %v681 = vunpack.c.l.b16 %v398
    %v682 = vunpack.c.h.b16 %v398
    %v683 = vunpack.c.l.b16 %v399
    %v684 = vunpack.c.h.b16 %v399
    %v685 = vunpack.c.l.b16 %v400
    %v686 = vunpack.c.h.b16 %v400
    %v687 = vunpack.c.l.b16 %v401
    %v688 = vunpack.c.h.b16 %v401
    %v689 = vunpack.c.l.b16 %v402
    %v690 = vunpack.c.h.b16 %v402
    %v691 = vunpack.c.l.b16 %v403
    %v692 = vunpack.c.h.b16 %v403
    %v693 = vunpack.c.l.b16 %v404
    %v694 = vunpack.c.h.b16 %v404
    %v695 = vunpack.c.l.b16 %v405
    %v696 = vunpack.c.h.b16 %v405
    %v697 = vunpack.c.l.b16 %v406
    %v698 = vunpack.c.h.b16 %v406
    %v699 = vunpack.c.l.b16 %v407
    %v700 = vunpack.c.h.b16 %v407
    %v701 = vunpack.c.l.b16 %v408
    %v702 = vunpack.c.h.b16 %v408
    %v703 = vunpack.c.l.b16 %v409
    %v704 = vunpack.c.h.b16 %v409
    %v705 = vunpack.c.l.b16 %v410
    %v706 = vunpack.c.h.b16 %v410
    %v707 = vunpack.c.l.b16 %v411
    %v708 = vunpack.c.h.b16 %v411
    %v709 = vunpack.c.l.b16 %v412
    %v710 = vunpack.c.h.b16 %v412
    %v711 = vunpack.c.l.b16 %v413
    %v712 = vunpack.c.h.b16 %v413
    %v713 = vunpack.c.l.b16 %v414
    %v714 = vunpack.c.h.b16 %v414
    %v715 = vunpack.c.l.b16 %v415
    %v716 = vunpack.c.h.b16 %v415
    %v717 = vunpack.c.l.b16 %v416
    %v718 = vunpack.c.h.b16 %v416
    %v719 = vunpack.c.l.b16 %v417
    %v720 = vunpack.c.h.b16 %v417
    %v721 = vunpack.c.l.b16 %v418
    %v722 = vunpack.c.h.b16 %v418
    %v723 = vunpack.c.l.b16 %v419
    %v724 = vunpack.c.h.b16 %v419
    %v725 = vunpack.c.l.b16 %v420
    %v726 = vunpack.c.h.b16 %v420
    %v727 = vunpack.c.l.b16 %v421
    %v728 = vunpack.c.h.b16 %v421
    %v729 = vunpack.c.l.b16 %v422
    %v730 = vunpack.c.h.b16 %v422
    %v731 = vunpack.c.l.b16 %v423
    %v732 = vunpack.c.h.b16 %v423
    %v733 = vunpack.c.l.b16 %v424
    %v734 = vunpack.c.h.b16 %v424
    %v735 = vunpack.c.l.b16 %v425
    %v736 = vunpack.c.h.b16 %v425
    %v737 = vunpack.c.l.b16 %v426
    %v738 = vunpack.c.h.b16 %v426
    %v739 = vunpack.c.l.b16 %v427
    %v740 = vunpack.c.h.b16 %v427
    %v741 = vunpack.c.l.b16 %v428
    %v742 = vunpack.c.h.b16 %v428
    %v743 = vunpack.c.l.b16 %v429
    %v744 = vunpack.c.h.b16 %v429
    %v745 = vunpack.c.l.b16 %v430
    %v746 = vunpack.c.h.b16 %v430
    %v747 = vunpack.c.l.b16 %v431
    %v748 = vunpack.c.h.b16 %v431
    %v749 = vunpack.c.l.b16 %v432
    %v750 = vunpack.c.h.b16 %v432
    %v751 = vunpack.c.l.b16 %v433
    %v752 = vunpack.c.h.b16 %v433
    %v753 = vunpack.c.l.b16 %v434
    %v754 = vunpack.c.h.b16 %v434
    %v755 = vunpack.c.l.b16 %v435
    %v756 = vunpack.c.h.b16 %v435
    %v757 = vunpack.c.l.b16 %v436
    %v758 = vunpack.c.h.b16 %v436
    %v759 = vunpack.c.l.b16 %v437
    %v760 = vunpack.c.h.b16 %v437
    %v761 = vunpack.c.l.b16 %v438
    %v762 = vunpack.c.h.b16 %v438
    %v763 = vunpack.c.l.b16 %v439
    %v764 = vunpack.c.h.b16 %v439
    %v765 = vunpack.c.l.b16 %v440
    %v766 = vunpack.c.h.b16 %v440
    %v767 = vunpack.c.l.b16 %v441
    %v768 = vunpack.c.h.b16 %v441
    %v769 = vunpack.c.l.b16 %v442
    %v770 = vunpack.c.h.b16 %v442
    %v771 = vunpack.c.l.b16 %v443
    %v772 = vunpack.c.h.b16 %v443
    %v773 = vunpack.c.l.b16 %v444
    %v774 = vunpack.c.h.b16 %v444
    %v775 = vunpack.c.l.b16 %v445
    %v776 = vunpack.c.h.b16 %v445
    %v777 = vunpack.c.l.b16 %v446
    %v778 = vunpack.c.h.b16 %v446
    %v779 = vunpack.c.l.b16 %v447
    %v780 = vunpack.c.h.b16 %v447
    %v781 = vunpack.c.l.b16 %v448
    %v782 = vunpack.c.h.b16 %v448
    %v783 = vunpack.c.l.b16 %v449
    %v784 = vunpack.c.h.b16 %v449
    %v785 = vunpack.c.l.b16 %v450
    %v786 = vunpack.c.h.b16 %v450
    %v787 = vunpack.c.l.b16 %v451
    %v788 = vunpack.c.h.b16 %v451
    %v789 = vunpack.c.l.b16 %v452
    %v790 = vunpack.c.h.b16 %v452
    %v791 = vunpack.c.l.b16 %v453
    %v792 = vunpack.c.h.b16 %v453
    %v793 = vunpack.c.l.b16 %v454
    %v794 = vunpack.c.h.b16 %v454
    %v795 = vunpack.c.l.b16 %v455
    %v796 = vunpack.c.h.b16 %v455
    %v797 = vunpack.c.l.b16 %v456
    %v798 = vunpack.c.h.b16 %v456
    %v799 = vunpack.c.l.b16 %v457
    %v800 = vunpack.c.h.b16 %v457
    %v801 = vunpack.c.l.b16 %v458
    %v802 = vunpack.c.h.b16 %v458
    %v803 = vunpack.c.l.b16 %v459
    %v804 = vunpack.c.h.b16 %v459
    %v805 = vunpack.c.l.b16 %v460
    %v806 = vunpack.c.h.b16 %v460
    %v807 = vunpack.c.l.b16 %v461
    %v808 = vunpack.c.h.b16 %v461
    %v809 = vunpack.c.l.b16 %v462
    %v810 = vunpack.c.h.b16 %v462
    %v811 = vunpack.c.l.b16 %v463
    %v812 = vunpack.c.h.b16 %v463
    %v813 = vunpack.c.l.b16 %v464
    %v814 = vunpack.c.h.b16 %v464
    %v815 = vunpack.c.l.b16 %v465
    %v816 = vunpack.c.h.b16 %v465
    %v817 = vunpack.c.l.b16 %v466
    %v818 = vunpack.c.h.b16 %v466
    %v819 = vunpack.c.l.b16 %v467
    %v820 = vunpack.c.h.b16 %v467
    %v821 = vunpack.c.l.b16 %v468
    %v822 = vunpack.c.h.b16 %v468
    %v823 = vunpack.c.l.b16 %v469
    %v824 = vunpack.c.h.b16 %v469
    %v825 = vunpack.c.l.b16 %v470
    %v826 = vunpack.c.h.b16 %v470
    %v827 = vunpack.c.l.b16 %v471
    %v828 = vunpack.c.h.b16 %v471
    %v829 = vunpack.c.l.b16 %v472
    %v830 = vunpack.c.h.b16 %v472
    %v831 = vunpack.c.l.b16 %v473
    %v832 = vunpack.c.h.b16 %v473
    %v833 = vunpack.c.l.b16 %v474
    %v834 = vunpack.c.h.b16 %v474
    %v835 = vunpack.c.l.b16 %v475
    %v836 = vunpack.c.h.b16 %v475
    %v837 = vunpack.c.l.b16 %v476
    %v838 = vunpack.c.h.b16 %v476
    %v839 = vunpack.c.l.b16 %v477
    %v840 = vunpack.c.h.b16 %v477
    %v841 = vunpack.c.l.b16 %v478
    %v842 = vunpack.c.h.b16 %v478
    %v843 = vunpack.c.l.b16 %v479
    %v844 = vunpack.c.h.b16 %v479
    %v845 = vunpack.c.l.b16 %v480
    %v846 = vunpack.c.h.b16 %v480
    %v847 = vunpack.c.l.b16 %v481
    %v848 = vunpack.c.h.b16 %v481
    %v849 = vunpack.c.l.b16 %v482
    %v850 = vunpack.c.h.b16 %v482
    %v851 = vunpack.c.l.b16 %v483
    %v852 = vunpack.c.h.b16 %v483
    %v853 = vunpack.c.l.b16 %v484
    %v854 = vunpack.c.h.b16 %v484
    %v855 = vunpack.c.l.b16 %v485
    %v856 = vunpack.c.h.b16 %v485
    %v857 = vunpack.c.l.b16 %v486
    %v858 = vunpack.c.h.b16 %v486
    %v859 = vunpack.c.l.b16 %v487
    %v860 = vunpack.c.h.b16 %v487
    %v861 = vunpack.c.l.b16 %v488
    %v862 = vunpack.c.h.b16 %v488
    %v863 = vunpack.c.l.b16 %v489
    %v864 = vunpack.c.h.b16 %v489
    %v865 = vunpack.c.l.b16 %v490
    %v866 = vunpack.c.h.b16 %v490
    %v867 = vunpack.c.l.b16 %v491
    %v868 = vunpack.c.h.b16 %v491
    %v869 = vunpack.c.l.b16 %v492
    %v870 = vunpack.c.h.b16 %v492
    %v871 = vunpack.c.l.b16 %v493
    %v872 = vunpack.c.h.b16 %v493
    %v873 = vunpack.c.l.b16 %v494
    %v874 = vunpack.c.h.b16 %v494
    %v875 = vunpack.c.l.b16 %v495
    %v876 = vunpack.c.h.b16 %v495
    %v877 = vunpack.c.l.b16 %v496
    %v878 = vunpack.c.h.b16 %v496
    %v879 = vunpack.c.l.b16 %v497
    %v880 = vunpack.c.h.b16 %v497
    %v881 = vunpack.c.l.b16 %v498
    %v882 = vunpack.c.h.b16 %v498
    %v883 = vunpack.c.l.b16 %v499
    %v884 = vunpack.c.h.b16 %v499
    %v885 = vunpack.c.l.b16 %v500
    %v886 = vunpack.c.h.b16 %v500
    %v887 = vunpack.c.l.b16 %v501
    %v888 = vunpack.c.h.b16 %v501
    %v889 = vunpack.c.l.b16 %v502
    %v890 = vunpack.c.h.b16 %v502
    %v891 = vunpack.c.l.b16 %v503
    %v892 = vunpack.c.h.b16 %v503
    %v893 = vunpack.c.l.b16 %v504
    %v894 = vunpack.c.h.b16 %v504
    %v895 = vunpack.c.l.b16 %v505
    %v896 = vunpack.c.h.b16 %v505
    %v897 = vunpack.c.l.b16 %v506
    %v898 = vunpack.c.h.b16 %v506
    %v899 = vunpack.c.l.b16 %v507
    %v900 = vunpack.c.h.b16 %v507
    %v901 = vunpack.c.l.b16 %v508
    %v902 = vunpack.c.h.b16 %v508
    %v903 = vunpack.c.l.b16 %v509
    %v904 = vunpack.c.h.b16 %v509
    %v905 = vunpack.c.l.b16 %v510
    %v906 = vunpack.c.h.b16 %v510
    %v907 = vunpack.c.l.b16 %v511
    %v908 = vunpack.c.h.b16 %v511
    %v909 = vunpack.c.l.b16 %v512
    %v910 = vunpack.c.h.b16 %v512
    %v911 = vunpack.c.l.b16 %v513
    %v912 = vunpack.c.h.b16 %v513
    %v913 = vunpack.c.l.b16 %v514
    %v914 = vunpack.c.h.b16 %v514
    %v915 = vunpack.c.l.b16 %v515
    %v916 = vunpack.c.h.b16 %v515
    %v917 = vunpack.c.l.b16 %v516
    %v918 = vunpack.c.h.b16 %v516
    %v919 = vunpack.c.l.b16 %v517
    %v920 = vunpack.c.h.b16 %v517
    %v921 = vunpack.c.l.b16 %v518
    %v922 = vunpack.c.h.b16 %v518
    %v923 = vunpack.c.l.b16 %v519
    %v924 = vunpack.c.h.b16 %v519
    %v925 = vunpack.c.l.b16 %v520
    %v926 = vunpack.c.h.b16 %v520
    %v927 = vpack.c.b16 %v675, %v671
    %v928 = vpack.c.b16 %v676, %v672
    %v929 = vpack.c.b16 %v677, %v673
    %v930 = vpack.c.b16 %v678, %v674
    %v931 = vpack.c.b16 %v683, %v679
    %v932 = vpack.c.b16 %v684, %v680
    %v933 = vpack.c.b16 %v685, %v681
    %v934 = vpack.c.b16 %v686, %v682
    %v935 = vpack.c.b16 %v691, %v687
    %v936 = vpack.c.b16 %v692, %v688
    %v937 = vpack.c.b16 %v693, %v689
    %v938 = vpack.c.b16 %v694, %v690
    %v939 = vpack.c.b16 %v699, %v695
    %v940 = vpack.c.b16 %v700, %v696
    %v941 = vpack.c.b16 %v701, %v697
    %v942 = vpack.c.b16 %v702, %v698
    %v943 = vpack.c.b16 %v707, %v703
    %v944 = vpack.c.b16 %v708, %v704
    %v945 = vpack.c.b16 %v709, %v705
    %v946 = vpack.c.b16 %v710, %v706
    %v947 = vpack.c.b16 %v715, %v711
    %v948 = vpack.c.b16 %v716, %v712
    %v949 = vpack.c.b16 %v717, %v713
    %v950 = vpack.c.b16 %v718, %v714
    %v951 = vpack.c.b16 %v723, %v719
    %v952 = vpack.c.b16 %v724, %v720
    %v953 = vpack.c.b16 %v725, %v721
    %v954 = vpack.c.b16 %v726, %v722
    %v955 = vpack.c.b16 %v731, %v727
    %v956 = vpack.c.b16 %v732, %v728
    %v957 = vpack.c.b16 %v733, %v729
    %v958 = vpack.c.b16 %v734, %v730
    %v959 = vpack.c.b16 %v739, %v735
    %v960 = vpack.c.b16 %v740, %v736
    %v961 = vpack.c.b16 %v741, %v737
    %v962 = vpack.c.b16 %v742, %v738
    %v963 = vpack.c.b16 %v747, %v743
    %v964 = vpack.c.b16 %v748, %v744
    %v965 = vpack.c.b16 %v749, %v745
    %v966 = vpack.c.b16 %v750, %v746
    %v967 = vpack.c.b16 %v755, %v751
    %v968 = vpack.c.b16 %v756, %v752
    %v969 = vpack.c.b16 %v757, %v753
    %v970 = vpack.c.b16 %v758, %v754
    %v971 = vpack.c.b16 %v763, %v759
    %v972 = vpack.c.b16 %v764, %v760
    %v973 = vpack.c.b16 %v765, %v761
    %v974 = vpack.c.b16 %v766, %v762
    %v975 = vpack.c.b16 %v771, %v767
    %v976 = vpack.c.b16 %v772, %v768
    %v977 = vpack.c.b16 %v773, %v769
    %v978 = vpack.c.b16 %v774, %v770
    %v979 = vpack.c.b16 %v779, %v775
    %v980 = vpack.c.b16 %v780, %v776
    %v981 = vpack.c.b16 %v781, %v777
    %v982 = vpack.c.b16 %v782, %v778
    %v983 = vpack.c.b16 %v787, %v783
    %v984 = vpack.c.b16 %v788, %v784
    %v985 = vpack.c.b16 %v789, %v785
    %v986 = vpack.c.b16 %v790, %v786
    %v987 = vpack.c.b16 %v795, %v791
    %v988 = vpack.c.b16 %v796, %v792
    %v989 = vpack.c.b16 %v797, %v793
    %v990 = vpack.c.b16 %v798, %v794
    %v991 = vpack.c.b16 %v803, %v799
    %v992 = vpack.c.b16 %v804, %v800
    %v993 = vpack.c.b16 %v805, %v801
    %v994 = vpack.c.b16 %v806, %v802
    %v995 = vpack.c.b16 %v811, %v807
    %v996 = vpack.c.b16 %v812, %v808
    %v997 = vpack.c.b16 %v813, %v809
    %v998 = vpack.c.b16 %v814, %v810
    %v999 = vpack.c.b16 %v819, %v815
    %v1000 = vpack.c.b16 %v820, %v816
    %v1001 = vpack.c.b16 %v821, %v817
    %v1002 = vpack.c.b16 %v822, %v818
    %v1003 = vpack.c.b16 %v827, %v823
    %v1004 = vpack.c.b16 %v828, %v824
    %v1005 = vpack.c.b16 %v829, %v825
    %v1006 = vpack.c.b16 %v830, %v826
    %v1007 = vpack.c.b16 %v835, %v831
    %v1008 = vpack.c.b16 %v836, %v832
    %v1009 = vpack.c.b16 %v837, %v833
    %v1010 = vpack.c.b16 %v838, %v834
    %v1011 = vpack.c.b16 %v843, %v839
    %v1012 = vpack.c.b16 %v844, %v840
    %v1013 = vpack.c.b16 %v845, %v841
    %v1014 = vpack.c.b16 %v846, %v842
    %v1015 = vpack.c.b16 %v851, %v847
    %v1016 = vpack.c.b16 %v852, %v848
    %v1017 = vpack.c.b16 %v853, %v849
    %v1018 = vpack.c.b16 %v854, %v850
    %v1019 = vpack.c.b16 %v859, %v855
    %v1020 = vpack.c.b16 %v860, %v856
    %v1021 = vpack.c.b16 %v861, %v857
    %v1022 = vpack.c.b16 %v862, %v858
    %v1023 = vpack.c.b16 %v867, %v863
    %v1024 = vpack.c.b16 %v868, %v864
    %v1025 = vpack.c.b16 %v869, %v865
    %v1026 = vpack.c.b16 %v870, %v866
    %v1027 = vpack.c.b16 %v875, %v871
    %v1028 = vpack.c.b16 %v876, %v872
    %v1029 = vpack.c.b16 %v877, %v873
    %v1030 = vpack.c.b16 %v878, %v874
    %v1031 = vpack.c.b16 %v883, %v879
    %v1032 = vpack.c.b16 %v884, %v880
    %v1033 = vpack.c.b16 %v885, %v881
    %v1034 = vpack.c.b16 %v886, %v882
    %v1035 = vpack.c.b16 %v891, %v887
    %v1036 = vpack.c.b16 %v892, %v888
    %v1037 = vpack.c.b16 %v893, %v889
    %v1038 = vpack.c.b16 %v894, %v890
    %v1039 = vpack.c.b16 %v899, %v895
    %v1040 = vpack.c.b16 %v900, %v896
    %v1041 = vpack.c.b16 %v901, %v897
    %v1042 = vpack.c.b16 %v902, %v898
    %v1043 = vpack.c.b16 %v907, %v903
    %v1044 = vpack.c.b16 %v908, %v904
    %v1045 = vpack.c.b16 %v909, %v905
    %v1046 = vpack.c.b16 %v910, %v906
    %v1047 = vpack.c.b16 %v915, %v911
    %v1048 = vpack.c.b16 %v916, %v912
    %v1049 = vpack.c.b16 %v917, %v913
    %v1050 = vpack.c.b16 %v918, %v914
    %v1051 = vpack.c.b16 %v923, %v919
    %v1052 = vpack.c.b16 %v924, %v920
    %v1053 = vpack.c.b16 %v925, %v921
    %v1054 = vpack.c.b16 %v926, %v922
    %1183 = vmatprep.subr.bf16.mxu0 %v928
    %1184 = vmatpush1.bf16.msra.mxu0 %v927
    %1185 = vmatprep.subr.bf16.mxu0 %v932
    %1186 = vmatpush1.bf16.msra.mxu0 %v931
    %1187 = vmatprep.subr.bf16.mxu0 %v936
    %1188 = vmatpush1.bf16.msra.mxu0 %v935
    %1189 = vmatprep.subr.bf16.mxu0 %v940
    %1190 = vmatpush1.bf16.msra.mxu0 %v939
    %1191 = vmatprep.subr.bf16.mxu0 %v944
    %1192 = vmatpush1.bf16.msra.mxu0 %v943
    %1193 = vmatprep.subr.bf16.mxu0 %v948
    %1194 = vmatpush1.bf16.msra.mxu0 %v947
    %1195 = vmatprep.subr.bf16.mxu0 %v952
    %1196 = vmatpush1.bf16.msra.mxu0 %v951
    %1197 = vmatprep.subr.bf16.mxu0 %v956
    %1198 = vmatpush1.bf16.msra.mxu0 %v955
    %1199 = vmatprep.subr.bf16.mxu0 %v960
    %1200 = vmatpush1.bf16.msra.mxu0 %v959
    %1201 = vmatprep.subr.bf16.mxu0 %v964
    %1202 = vmatpush1.bf16.msra.mxu0 %v963
    %1203 = vmatprep.subr.bf16.mxu0 %v968
    %1204 = vmatpush1.bf16.msra.mxu0 %v967
    %1205 = vmatprep.subr.bf16.mxu0 %v972
    %1206 = vmatpush1.bf16.msra.mxu0 %v971
    %1207 = vmatprep.subr.bf16.mxu0 %v976
    %1208 = vmatpush1.bf16.msra.mxu0 %v975
    %1209 = vmatprep.subr.bf16.mxu0 %v980
    %1210 = vmatpush1.bf16.msra.mxu0 %v979
    %1211 = vmatprep.subr.bf16.mxu0 %v984
    %1212 = vmatpush1.bf16.msra.mxu0 %v983
    %1213 = vmatprep.subr.bf16.mxu0 %v988
    %1214 = vmatpush1.bf16.msra.mxu0 %v987
    %1215 = vmatprep.mubr.bf16.mxu0 %v390
    %1216 = vmatmul.mubr.bf16.gmra.mrb[0].mxu0 %v389
    %v1217 = vpop.f32.mrb[0].mxu0
    %v1218 = vadd.f32 %v526, %v1217
    %v1219 = vpop.f32.mrb[0].mxu0
    %v1220 = vadd.f32 %v530, %v1219
    %v1221 = vpop.f32.mrb[0].mxu0
    %v1222 = vpop.f32.mrb[0].mxu0
    %1223 = vdwg.mxu0
    %1224 = vmatprep.subr.bf16.mxu0 %v992
    %1225 = vmatpush1.bf16.msra.mxu0 %v991
    %1226 = vmatprep.subr.bf16.mxu0 %v996
    %1227 = vmatpush1.bf16.msra.mxu0 %v995
    %1228 = vmatprep.subr.bf16.mxu0 %v1000
    %1229 = vmatpush1.bf16.msra.mxu0 %v999
    %1230 = vmatprep.subr.bf16.mxu0 %v1004
    %1231 = vmatpush1.bf16.msra.mxu0 %v1003
    %1232 = vmatprep.subr.bf16.mxu0 %v1008
    %1233 = vmatpush1.bf16.msra.mxu0 %v1007
    %1234 = vmatprep.subr.bf16.mxu0 %v1012
    %1235 = vmatpush1.bf16.msra.mxu0 %v1011
    %1236 = vmatprep.subr.bf16.mxu0 %v1016
    %1237 = vmatpush1.bf16.msra.mxu0 %v1015
    %1238 = vmatprep.subr.bf16.mxu0 %v1020
    %1239 = vmatpush1.bf16.msra.mxu0 %v1019
    %1240 = vmatprep.subr.bf16.mxu0 %v1024
    %1241 = vmatpush1.bf16.msra.mxu0 %v1023
    %1242 = vmatprep.subr.bf16.mxu0 %v1028
    %1243 = vmatpush1.bf16.msra.mxu0 %v1027
    %1244 = vmatprep.subr.bf16.mxu0 %v1032
    %1245 = vmatpush1.bf16.msra.mxu0 %v1031
    %1246 = vmatprep.subr.bf16.mxu0 %v1036
    %1247 = vmatpush1.bf16.msra.mxu0 %v1035
    %1248 = vmatprep.subr.bf16.mxu0 %v1040
    %1249 = vmatpush1.bf16.msra.mxu0 %v1039
    %1250 = vmatprep.subr.bf16.mxu0 %v1044
    %1251 = vmatpush1.bf16.msra.mxu0 %v1043
    %1252 = vmatprep.subr.bf16.mxu0 %v1048
    %1253 = vmatpush1.bf16.msra.mxu0 %v1047
    %1254 = vmatprep.subr.bf16.mxu0 %v1052
    %1255 = vmatpush1.bf16.msra.mxu0 %v1051
    %1256 = vmatprep.mubr.bf16.mxu0 %v392
    %1257 = vmatmul.mubr.bf16.gmra.mrb[0].mxu0 %v391
    %v1258 = vpop.f32.mrb[0].mxu0
    %v1259 = vadd.f32 %v1218, %v1258
    %v1260 = vpop.f32.mrb[0].mxu0
    %v1261 = vadd.f32 %v1220, %v1260
    %v1262 = vpop.f32.mrb[0].mxu0
    %v1263 = vpop.f32.mrb[0].mxu0
    %1264 = vdwg.mxu0
    %1265 = vmatprep.subr.bf16.mxu0 %v930
    %1266 = vmatpush1.bf16.msra.mxu0 %v929
    %1267 = vmatprep.subr.bf16.mxu0 %v934
    %1268 = vmatpush1.bf16.msra.mxu0 %v933
    %1269 = vmatprep.subr.bf16.mxu0 %v938
    %1270 = vmatpush1.bf16.msra.mxu0 %v937
    %1271 = vmatprep.subr.bf16.mxu0 %v942
    %1272 = vmatpush1.bf16.msra.mxu0 %v941
    %1273 = vmatprep.subr.bf16.mxu0 %v946
    %1274 = vmatpush1.bf16.msra.mxu0 %v945
    %1275 = vmatprep.subr.bf16.mxu0 %v950
    %1276 = vmatpush1.bf16.msra.mxu0 %v949
    %1277 = vmatprep.subr.bf16.mxu0 %v954
    %1278 = vmatpush1.bf16.msra.mxu0 %v953
    %1279 = vmatprep.subr.bf16.mxu0 %v958
    %1280 = vmatpush1.bf16.msra.mxu0 %v957
    %1281 = vmatprep.subr.bf16.mxu0 %v962
    %1282 = vmatpush1.bf16.msra.mxu0 %v961
    %1283 = vmatprep.subr.bf16.mxu0 %v966
    %1284 = vmatpush1.bf16.msra.mxu0 %v965
    %1285 = vmatprep.subr.bf16.mxu0 %v970
    %1286 = vmatpush1.bf16.msra.mxu0 %v969
    %1287 = vmatprep.subr.bf16.mxu0 %v974
    %1288 = vmatpush1.bf16.msra.mxu0 %v973
    %1289 = vmatprep.subr.bf16.mxu0 %v978
    %1290 = vmatpush1.bf16.msra.mxu0 %v977
    %1291 = vmatprep.subr.bf16.mxu0 %v982
    %1292 = vmatpush1.bf16.msra.mxu0 %v981
    %1293 = vmatprep.subr.bf16.mxu0 %v986
    %1294 = vmatpush1.bf16.msra.mxu0 %v985
    %1295 = vmatprep.subr.bf16.mxu0 %v990
    %1296 = vmatpush1.bf16.msra.mxu0 %v989
    %1297 = vmatprep.mubr.bf16.mxu0 %v390
    %1298 = vmatmul.mubr.bf16.gmra.mrb[0].mxu0 %v389
    %v1299 = vpop.f32.mrb[0].mxu0
    %v1300 = vadd.f32 %v534, %v1299
    %v1301 = vpop.f32.mrb[0].mxu0
    %v1302 = vadd.f32 %v538, %v1301
    %v1303 = vpop.f32.mrb[0].mxu0
    %v1304 = vpop.f32.mrb[0].mxu0
    %1305 = vdwg.mxu0
    %1306 = vmatprep.subr.bf16.mxu0 %v994
    %1307 = vmatpush1.bf16.msra.mxu0 %v993
    %1308 = vmatprep.subr.bf16.mxu0 %v998
    %1309 = vmatpush1.bf16.msra.mxu0 %v997
    %1310 = vmatprep.subr.bf16.mxu0 %v1002
    %1311 = vmatpush1.bf16.msra.mxu0 %v1001
    %1312 = vmatprep.subr.bf16.mxu0 %v1006
    %1313 = vmatpush1.bf16.msra.mxu0 %v1005
    %1314 = vmatprep.subr.bf16.mxu0 %v1010
    %1315 = vmatpush1.bf16.msra.mxu0 %v1009
    %1316 = vmatprep.subr.bf16.mxu0 %v1014
    %1317 = vmatpush1.bf16.msra.mxu0 %v1013
    %1318 = vmatprep.subr.bf16.mxu0 %v1018
    %1319 = vmatpush1.bf16.msra.mxu0 %v1017
    %1320 = vmatprep.subr.bf16.mxu0 %v1022
    %1321 = vmatpush1.bf16.msra.mxu0 %v1021
    %1322 = vmatprep.subr.bf16.mxu0 %v1026
    %1323 = vmatpush1.bf16.msra.mxu0 %v1025
    %1324 = vmatprep.subr.bf16.mxu0 %v1030
    %1325 = vmatpush1.bf16.msra.mxu0 %v1029
    %1326 = vmatprep.subr.bf16.mxu0 %v1034
    %1327 = vmatpush1.bf16.msra.mxu0 %v1033
    %1328 = vmatprep.subr.bf16.mxu0 %v1038
    %1329 = vmatpush1.bf16.msra.mxu0 %v1037
    %1330 = vmatprep.subr.bf16.mxu0 %v1042
    %1331 = vmatpush1.bf16.msra.mxu0 %v1041
    %1332 = vmatprep.subr.bf16.mxu0 %v1046
    %1333 = vmatpush1.bf16.msra.mxu0 %v1045
    %1334 = vmatprep.subr.bf16.mxu0 %v1050
    %1335 = vmatpush1.bf16.msra.mxu0 %v1049
    %1336 = vmatprep.subr.bf16.mxu0 %v1054
    %1337 = vmatpush1.bf16.msra.mxu0 %v1053
    %1338 = vmatprep.mubr.bf16.mxu0 %v392
    %1339 = vmatmul.mubr.bf16.gmra.mrb[0].mxu0 %v391
    %v1340 = vpop.f32.mrb[0].mxu0
    %v1341 = vadd.f32 %v1300, %v1340
    %v1342 = vpop.f32.mrb[0].mxu0
    %v1343 = vadd.f32 %v1302, %v1342
    %v1344 = vpop.f32.mrb[0].mxu0
    %v1345 = vpop.f32.mrb[0].mxu0
    %1346 = vdwg.mxu0
    %v1347 = vmax.f32 %v1259, 0.0
    %v1348 = vmax.f32 %v1261, 0.0
    %v1349 = vmax.f32 %v1341, 0.0
    %v1350 = vmax.f32 %v1343, 0.0
    %v1351 = vpack.c.bf16 %v1347, %v1347
    %v1352 = vpack.c.bf16 %v1348, %v1348
    %v1353 = vpack.c.bf16 %v1349, %v1349
    %v1354 = vpack.c.bf16 %v1350, %v1350
    %v1355 = vld [vmem:[#allocation6] sm:$0xff]
    %v1356 = vld [vmem:[#allocation6 + $0x8] sm:$0xff]
    %v1357 = vld [vmem:[#allocation6 + $0x10] sm:$0xff]
    %v1358 = vld [vmem:[#allocation6 + $0x18] sm:$0xff]
    %v1359 = vld [vmem:[#allocation6 + $0x20] sm:$0xff]
    %v1360 = vld [vmem:[#allocation6 + $0x28] sm:$0xff]
    %v1361 = vld [vmem:[#allocation6 + $0x30] sm:$0xff]
    %v1362 = vld [vmem:[#allocation6 + $0x38] sm:$0xff]
    %v1363 = vld [vmem:[#allocation6 + $0x40] sm:$0xff]
    %v1364 = vld [vmem:[#allocation6 + $0x48] sm:$0xff]
    %v1365 = vld [vmem:[#allocation6 + $0x50] sm:$0xff]
    %v1366 = vld [vmem:[#allocation6 + $0x58] sm:$0xff]
    %v1367 = vld [vmem:[#allocation6 + $0x60] sm:$0xff]
    %v1368 = vld [vmem:[#allocation6 + $0x68] sm:$0xff]
    %v1369 = vld [vmem:[#allocation6 + $0x70] sm:$0xff]
    %v1370 = vld [vmem:[#allocation6 + $0x78] sm:$0xff]
    %v1371 = vld [vmem:[#allocation6 + $0x80] sm:$0xff]
    %v1372 = vld [vmem:[#allocation6 + $0x88] sm:$0xff]
    %v1373 = vld [vmem:[#allocation6 + $0x90] sm:$0xff]
    %v1374 = vld [vmem:[#allocation6 + $0x98] sm:$0xff]
    %v1375 = vld [vmem:[#allocation6 + $0xa0] sm:$0xff]
    %v1376 = vld [vmem:[#allocation6 + $0xa8] sm:$0xff]
    %v1377 = vld [vmem:[#allocation6 + $0xb0] sm:$0xff]
    %v1378 = vld [vmem:[#allocation6 + $0xb8] sm:$0xff]
    %v1379 = vld [vmem:[#allocation6 + $0xc0] sm:$0xff]
    %v1380 = vld [vmem:[#allocation6 + $0xc8] sm:$0xff]
    %v1381 = vld [vmem:[#allocation6 + $0xd0] sm:$0xff]
    %v1382 = vld [vmem:[#allocation6 + $0xd8] sm:$0xff]
    %v1383 = vld [vmem:[#allocation6 + $0xe0] sm:$0xff]
    %v1384 = vld [vmem:[#allocation6 + $0xe8] sm:$0xff]
    %v1385 = vld [vmem:[#allocation6 + $0xf0] sm:$0xff]
    %v1386 = vld [vmem:[#allocation6 + $0xf8] sm:$0xff]
    %v1387 = vld [vmem:[#allocation6 + $0x100] sm:$0xff]
    %v1388 = vld [vmem:[#allocation6 + $0x108] sm:$0xff]
    %v1389 = vld [vmem:[#allocation6 + $0x110] sm:$0xff]
    %v1390 = vld [vmem:[#allocation6 + $0x118] sm:$0xff]
    %v1391 = vld [vmem:[#allocation6 + $0x120] sm:$0xff]
    %v1392 = vld [vmem:[#allocation6 + $0x128] sm:$0xff]
    %v1393 = vld [vmem:[#allocation6 + $0x130] sm:$0xff]
    %v1394 = vld [vmem:[#allocation6 + $0x138] sm:$0xff]
    %v1395 = vld [vmem:[#allocation6 + $0x140] sm:$0xff]
    %v1396 = vld [vmem:[#allocation6 + $0x148] sm:$0xff]
    %v1397 = vld [vmem:[#allocation6 + $0x150] sm:$0xff]
    %v1398 = vld [vmem:[#allocation6 + $0x158] sm:$0xff]
    %v1399 = vld [vmem:[#allocation6 + $0x160] sm:$0xff]
    %v1400 = vld [vmem:[#allocation6 + $0x168] sm:$0xff]
    %v1401 = vld [vmem:[#allocation6 + $0x170] sm:$0xff]
    %v1402 = vld [vmem:[#allocation6 + $0x178] sm:$0xff]
    %v1403 = vld [vmem:[#allocation6 + $0x180] sm:$0xff]
    %v1404 = vld [vmem:[#allocation6 + $0x188] sm:$0xff]
    %v1405 = vld [vmem:[#allocation6 + $0x190] sm:$0xff]
    %v1406 = vld [vmem:[#allocation6 + $0x198] sm:$0xff]
    %v1407 = vld [vmem:[#allocation6 + $0x1a0] sm:$0xff]
    %v1408 = vld [vmem:[#allocation6 + $0x1a8] sm:$0xff]
    %v1409 = vld [vmem:[#allocation6 + $0x1b0] sm:$0xff]
    %v1410 = vld [vmem:[#allocation6 + $0x1b8] sm:$0xff]
    %v1411 = vld [vmem:[#allocation6 + $0x1c0] sm:$0xff]
    %v1412 = vld [vmem:[#allocation6 + $0x1c8] sm:$0xff]
    %v1413 = vld [vmem:[#allocation6 + $0x1d0] sm:$0xff]
    %v1414 = vld [vmem:[#allocation6 + $0x1d8] sm:$0xff]
    %v1415 = vld [vmem:[#allocation6 + $0x1e0] sm:$0xff]
    %v1416 = vld [vmem:[#allocation6 + $0x1e8] sm:$0xff]
    %v1417 = vld [vmem:[#allocation6 + $0x1f0] sm:$0xff]
    %v1418 = vld [vmem:[#allocation6 + $0x1f8] sm:$0xff]
    %v1419 = vld [vmem:[#allocation6 + $0x200] sm:$0xff]
    %v1420 = vld [vmem:[#allocation6 + $0x208] sm:$0xff]
    %v1421 = vld [vmem:[#allocation6 + $0x210] sm:$0xff]
    %v1422 = vld [vmem:[#allocation6 + $0x218] sm:$0xff]
    %v1423 = vld [vmem:[#allocation6 + $0x220] sm:$0xff]
    %v1424 = vld [vmem:[#allocation6 + $0x228] sm:$0xff]
    %v1425 = vld [vmem:[#allocation6 + $0x230] sm:$0xff]
    %v1426 = vld [vmem:[#allocation6 + $0x238] sm:$0xff]
    %v1427 = vld [vmem:[#allocation6 + $0x240] sm:$0xff]
    %v1428 = vld [vmem:[#allocation6 + $0x248] sm:$0xff]
    %v1429 = vld [vmem:[#allocation6 + $0x250] sm:$0xff]
    %v1430 = vld [vmem:[#allocation6 + $0x258] sm:$0xff]
    %v1431 = vld [vmem:[#allocation6 + $0x260] sm:$0xff]
    %v1432 = vld [vmem:[#allocation6 + $0x268] sm:$0xff]
    %v1433 = vld [vmem:[#allocation6 + $0x270] sm:$0xff]
    %v1434 = vld [vmem:[#allocation6 + $0x278] sm:$0xff]
    %v1435 = vld [vmem:[#allocation6 + $0x280] sm:$0xff]
    %v1436 = vld [vmem:[#allocation6 + $0x288] sm:$0xff]
    %v1437 = vld [vmem:[#allocation6 + $0x290] sm:$0xff]
    %v1438 = vld [vmem:[#allocation6 + $0x298] sm:$0xff]
    %v1439 = vld [vmem:[#allocation6 + $0x2a0] sm:$0xff]
    %v1440 = vld [vmem:[#allocation6 + $0x2a8] sm:$0xff]
    %v1441 = vld [vmem:[#allocation6 + $0x2b0] sm:$0xff]
    %v1442 = vld [vmem:[#allocation6 + $0x2b8] sm:$0xff]
    %v1443 = vld [vmem:[#allocation6 + $0x2c0] sm:$0xff]
    %v1444 = vld [vmem:[#allocation6 + $0x2c8] sm:$0xff]
    %v1445 = vld [vmem:[#allocation6 + $0x2d0] sm:$0xff]
    %v1446 = vld [vmem:[#allocation6 + $0x2d8] sm:$0xff]
    %v1447 = vld [vmem:[#allocation6 + $0x2e0] sm:$0xff]
    %v1448 = vld [vmem:[#allocation6 + $0x2e8] sm:$0xff]
    %v1449 = vld [vmem:[#allocation6 + $0x2f0] sm:$0xff]
    %v1450 = vld [vmem:[#allocation6 + $0x2f8] sm:$0xff]
    %v1451 = vld [vmem:[#allocation6 + $0x300] sm:$0xff]
    %v1452 = vld [vmem:[#allocation6 + $0x308] sm:$0xff]
    %v1453 = vld [vmem:[#allocation6 + $0x310] sm:$0xff]
    %v1454 = vld [vmem:[#allocation6 + $0x318] sm:$0xff]
    %v1455 = vld [vmem:[#allocation6 + $0x320] sm:$0xff]
    %v1456 = vld [vmem:[#allocation6 + $0x328] sm:$0xff]
    %v1457 = vld [vmem:[#allocation6 + $0x330] sm:$0xff]
    %v1458 = vld [vmem:[#allocation6 + $0x338] sm:$0xff]
    %v1459 = vld [vmem:[#allocation6 + $0x340] sm:$0xff]
    %v1460 = vld [vmem:[#allocation6 + $0x348] sm:$0xff]
    %v1461 = vld [vmem:[#allocation6 + $0x350] sm:$0xff]
    %v1462 = vld [vmem:[#allocation6 + $0x358] sm:$0xff]
    %v1463 = vld [vmem:[#allocation6 + $0x360] sm:$0xff]
    %v1464 = vld [vmem:[#allocation6 + $0x368] sm:$0xff]
    %v1465 = vld [vmem:[#allocation6 + $0x370] sm:$0xff]
    %v1466 = vld [vmem:[#allocation6 + $0x378] sm:$0xff]
    %v1467 = vld [vmem:[#allocation6 + $0x380] sm:$0xff]
    %v1468 = vld [vmem:[#allocation6 + $0x388] sm:$0xff]
    %v1469 = vld [vmem:[#allocation6 + $0x390] sm:$0xff]
    %v1470 = vld [vmem:[#allocation6 + $0x398] sm:$0xff]
    %v1471 = vld [vmem:[#allocation6 + $0x3a0] sm:$0xff]
    %v1472 = vld [vmem:[#allocation6 + $0x3a8] sm:$0xff]
    %v1473 = vld [vmem:[#allocation6 + $0x3b0] sm:$0xff]
    %v1474 = vld [vmem:[#allocation6 + $0x3b8] sm:$0xff]
    %v1475 = vld [vmem:[#allocation6 + $0x3c0] sm:$0xff]
    %v1476 = vld [vmem:[#allocation6 + $0x3c8] sm:$0xff]
    %v1477 = vld [vmem:[#allocation6 + $0x3d0] sm:$0xff]
    %v1478 = vld [vmem:[#allocation6 + $0x3d8] sm:$0xff]
    %v1479 = vld [vmem:[#allocation6 + $0x3e0] sm:$0xff]
    %v1480 = vld [vmem:[#allocation6 + $0x3e8] sm:$0xff]
    %v1481 = vld [vmem:[#allocation6 + $0x3f0] sm:$0xff]
    %v1482 = vld [vmem:[#allocation6 + $0x3f8] sm:$0xff]
    %v1483 = vld [vmem:[%s6] sm:$0xf]
    %v1485 = vlaneseq
    %v1486 = vshrl.u32 %v1485, 7
    %v1487 = vsub.s32 0, %v1486
    %v1488 = vrot.slane %v1483, %v1487
    %v1489 = vlaneseq
    %v1490 = vshrl.u32 %v1489, 7
    %v1491 = vsub.s32 1, %v1490
    %v1492 = vrot.slane %v1483, %v1491
    %v1493 = vlaneseq
    %v1494 = vshrl.u32 %v1493, 7
    %v1495 = vsub.s32 2, %v1494
    %v1496 = vrot.slane %v1483, %v1495
    %v1497 = vlaneseq
    %v1498 = vshrl.u32 %v1497, 7
    %v1499 = vsub.s32 3, %v1498
    %v1500 = vrot.slane %v1483, %v1499
    %v1633 = vunpack.c.l.b16 %v1355
    %v1634 = vunpack.c.h.b16 %v1355
    %v1635 = vunpack.c.l.b16 %v1356
    %v1636 = vunpack.c.h.b16 %v1356
    %v1637 = vunpack.c.l.b16 %v1357
    %v1638 = vunpack.c.h.b16 %v1357
    %v1639 = vunpack.c.l.b16 %v1358
    %v1640 = vunpack.c.h.b16 %v1358
    %v1641 = vunpack.c.l.b16 %v1359
    %v1642 = vunpack.c.h.b16 %v1359
    %v1643 = vunpack.c.l.b16 %v1360
    %v1644 = vunpack.c.h.b16 %v1360
    %v1645 = vunpack.c.l.b16 %v1361
    %v1646 = vunpack.c.h.b16 %v1361
    %v1647 = vunpack.c.l.b16 %v1362
    %v1648 = vunpack.c.h.b16 %v1362
    %v1649 = vunpack.c.l.b16 %v1363
    %v1650 = vunpack.c.h.b16 %v1363
    %v1651 = vunpack.c.l.b16 %v1364
    %v1652 = vunpack.c.h.b16 %v1364
    %v1653 = vunpack.c.l.b16 %v1365
    %v1654 = vunpack.c.h.b16 %v1365
    %v1655 = vunpack.c.l.b16 %v1366
    %v1656 = vunpack.c.h.b16 %v1366
    %v1657 = vunpack.c.l.b16 %v1367
    %v1658 = vunpack.c.h.b16 %v1367
    %v1659 = vunpack.c.l.b16 %v1368
    %v1660 = vunpack.c.h.b16 %v1368
    %v1661 = vunpack.c.l.b16 %v1369
    %v1662 = vunpack.c.h.b16 %v1369
    %v1663 = vunpack.c.l.b16 %v1370
    %v1664 = vunpack.c.h.b16 %v1370
    %v1665 = vunpack.c.l.b16 %v1371
    %v1666 = vunpack.c.h.b16 %v1371
    %v1667 = vunpack.c.l.b16 %v1372
    %v1668 = vunpack.c.h.b16 %v1372
    %v1669 = vunpack.c.l.b16 %v1373
    %v1670 = vunpack.c.h.b16 %v1373
    %v1671 = vunpack.c.l.b16 %v1374
    %v1672 = vunpack.c.h.b16 %v1374
    %v1673 = vunpack.c.l.b16 %v1375
    %v1674 = vunpack.c.h.b16 %v1375
    %v1675 = vunpack.c.l.b16 %v1376
    %v1676 = vunpack.c.h.b16 %v1376
    %v1677 = vunpack.c.l.b16 %v1377
    %v1678 = vunpack.c.h.b16 %v1377
    %v1679 = vunpack.c.l.b16 %v1378
    %v1680 = vunpack.c.h.b16 %v1378
    %v1681 = vunpack.c.l.b16 %v1379
    %v1682 = vunpack.c.h.b16 %v1379
    %v1683 = vunpack.c.l.b16 %v1380
    %v1684 = vunpack.c.h.b16 %v1380
    %v1685 = vunpack.c.l.b16 %v1381
    %v1686 = vunpack.c.h.b16 %v1381
    %v1687 = vunpack.c.l.b16 %v1382
    %v1688 = vunpack.c.h.b16 %v1382
    %v1689 = vunpack.c.l.b16 %v1383
    %v1690 = vunpack.c.h.b16 %v1383
    %v1691 = vunpack.c.l.b16 %v1384
    %v1692 = vunpack.c.h.b16 %v1384
    %v1693 = vunpack.c.l.b16 %v1385
    %v1694 = vunpack.c.h.b16 %v1385
    %v1695 = vunpack.c.l.b16 %v1386
    %v1696 = vunpack.c.h.b16 %v1386
    %v1697 = vunpack.c.l.b16 %v1387
    %v1698 = vunpack.c.h.b16 %v1387
    %v1699 = vunpack.c.l.b16 %v1388
    %v1700 = vunpack.c.h.b16 %v1388
    %v1701 = vunpack.c.l.b16 %v1389
    %v1702 = vunpack.c.h.b16 %v1389
    %v1703 = vunpack.c.l.b16 %v1390
    %v1704 = vunpack.c.h.b16 %v1390
    %v1705 = vunpack.c.l.b16 %v1391
    %v1706 = vunpack.c.h.b16 %v1391
    %v1707 = vunpack.c.l.b16 %v1392
    %v1708 = vunpack.c.h.b16 %v1392
    %v1709 = vunpack.c.l.b16 %v1393
    %v1710 = vunpack.c.h.b16 %v1393
    %v1711 = vunpack.c.l.b16 %v1394
    %v1712 = vunpack.c.h.b16 %v1394
    %v1713 = vunpack.c.l.b16 %v1395
    %v1714 = vunpack.c.h.b16 %v1395
    %v1715 = vunpack.c.l.b16 %v1396
    %v1716 = vunpack.c.h.b16 %v1396
    %v1717 = vunpack.c.l.b16 %v1397
    %v1718 = vunpack.c.h.b16 %v1397
    %v1719 = vunpack.c.l.b16 %v1398
    %v1720 = vunpack.c.h.b16 %v1398
    %v1721 = vunpack.c.l.b16 %v1399
    %v1722 = vunpack.c.h.b16 %v1399
    %v1723 = vunpack.c.l.b16 %v1400
    %v1724 = vunpack.c.h.b16 %v1400
    %v1725 = vunpack.c.l.b16 %v1401
    %v1726 = vunpack.c.h.b16 %v1401
    %v1727 = vunpack.c.l.b16 %v1402
    %v1728 = vunpack.c.h.b16 %v1402
    %v1729 = vunpack.c.l.b16 %v1403
    %v1730 = vunpack.c.h.b16 %v1403
    %v1731 = vunpack.c.l.b16 %v1404
    %v1732 = vunpack.c.h.b16 %v1404
    %v1733 = vunpack.c.l.b16 %v1405
    %v1734 = vunpack.c.h.b16 %v1405
    %v1735 = vunpack.c.l.b16 %v1406
    %v1736 = vunpack.c.h.b16 %v1406
    %v1737 = vunpack.c.l.b16 %v1407
    %v1738 = vunpack.c.h.b16 %v1407
    %v1739 = vunpack.c.l.b16 %v1408
    %v1740 = vunpack.c.h.b16 %v1408
    %v1741 = vunpack.c.l.b16 %v1409
    %v1742 = vunpack.c.h.b16 %v1409
    %v1743 = vunpack.c.l.b16 %v1410
    %v1744 = vunpack.c.h.b16 %v1410
    %v1745 = vunpack.c.l.b16 %v1411
    %v1746 = vunpack.c.h.b16 %v1411
    %v1747 = vunpack.c.l.b16 %v1412
    %v1748 = vunpack.c.h.b16 %v1412
    %v1749 = vunpack.c.l.b16 %v1413
    %v1750 = vunpack.c.h.b16 %v1413
    %v1751 = vunpack.c.l.b16 %v1414
    %v1752 = vunpack.c.h.b16 %v1414
    %v1753 = vunpack.c.l.b16 %v1415
    %v1754 = vunpack.c.h.b16 %v1415
    %v1755 = vunpack.c.l.b16 %v1416
    %v1756 = vunpack.c.h.b16 %v1416
    %v1757 = vunpack.c.l.b16 %v1417
    %v1758 = vunpack.c.h.b16 %v1417
    %v1759 = vunpack.c.l.b16 %v1418
    %v1760 = vunpack.c.h.b16 %v1418
    %v1761 = vunpack.c.l.b16 %v1419
    %v1762 = vunpack.c.h.b16 %v1419
    %v1763 = vunpack.c.l.b16 %v1420
    %v1764 = vunpack.c.h.b16 %v1420
    %v1765 = vunpack.c.l.b16 %v1421
    %v1766 = vunpack.c.h.b16 %v1421
    %v1767 = vunpack.c.l.b16 %v1422
    %v1768 = vunpack.c.h.b16 %v1422
    %v1769 = vunpack.c.l.b16 %v1423
    %v1770 = vunpack.c.h.b16 %v1423
    %v1771 = vunpack.c.l.b16 %v1424
    %v1772 = vunpack.c.h.b16 %v1424
    %v1773 = vunpack.c.l.b16 %v1425
    %v1774 = vunpack.c.h.b16 %v1425
    %v1775 = vunpack.c.l.b16 %v1426
    %v1776 = vunpack.c.h.b16 %v1426
    %v1777 = vunpack.c.l.b16 %v1427
    %v1778 = vunpack.c.h.b16 %v1427
    %v1779 = vunpack.c.l.b16 %v1428
    %v1780 = vunpack.c.h.b16 %v1428
    %v1781 = vunpack.c.l.b16 %v1429
    %v1782 = vunpack.c.h.b16 %v1429
    %v1783 = vunpack.c.l.b16 %v1430
    %v1784 = vunpack.c.h.b16 %v1430
    %v1785 = vunpack.c.l.b16 %v1431
    %v1786 = vunpack.c.h.b16 %v1431
    %v1787 = vunpack.c.l.b16 %v1432
    %v1788 = vunpack.c.h.b16 %v1432
    %v1789 = vunpack.c.l.b16 %v1433
    %v1790 = vunpack.c.h.b16 %v1433
    %v1791 = vunpack.c.l.b16 %v1434
    %v1792 = vunpack.c.h.b16 %v1434
    %v1793 = vunpack.c.l.b16 %v1435
    %v1794 = vunpack.c.h.b16 %v1435
    %v1795 = vunpack.c.l.b16 %v1436
    %v1796 = vunpack.c.h.b16 %v1436
    %v1797 = vunpack.c.l.b16 %v1437
    %v1798 = vunpack.c.h.b16 %v1437
    %v1799 = vunpack.c.l.b16 %v1438
    %v1800 = vunpack.c.h.b16 %v1438
    %v1801 = vunpack.c.l.b16 %v1439
    %v1802 = vunpack.c.h.b16 %v1439
    %v1803 = vunpack.c.l.b16 %v1440
    %v1804 = vunpack.c.h.b16 %v1440
    %v1805 = vunpack.c.l.b16 %v1441
    %v1806 = vunpack.c.h.b16 %v1441
    %v1807 = vunpack.c.l.b16 %v1442
    %v1808 = vunpack.c.h.b16 %v1442
    %v1809 = vunpack.c.l.b16 %v1443
    %v1810 = vunpack.c.h.b16 %v1443
    %v1811 = vunpack.c.l.b16 %v1444
    %v1812 = vunpack.c.h.b16 %v1444
    %v1813 = vunpack.c.l.b16 %v1445
    %v1814 = vunpack.c.h.b16 %v1445
    %v1815 = vunpack.c.l.b16 %v1446
    %v1816 = vunpack.c.h.b16 %v1446
    %v1817 = vunpack.c.l.b16 %v1447
    %v1818 = vunpack.c.h.b16 %v1447
    %v1819 = vunpack.c.l.b16 %v1448
    %v1820 = vunpack.c.h.b16 %v1448
    %v1821 = vunpack.c.l.b16 %v1449
    %v1822 = vunpack.c.h.b16 %v1449
    %v1823 = vunpack.c.l.b16 %v1450
    %v1824 = vunpack.c.h.b16 %v1450
    %v1825 = vunpack.c.l.b16 %v1451
    %v1826 = vunpack.c.h.b16 %v1451
    %v1827 = vunpack.c.l.b16 %v1452
    %v1828 = vunpack.c.h.b16 %v1452
    %v1829 = vunpack.c.l.b16 %v1453
    %v1830 = vunpack.c.h.b16 %v1453
    %v1831 = vunpack.c.l.b16 %v1454
    %v1832 = vunpack.c.h.b16 %v1454
    %v1833 = vunpack.c.l.b16 %v1455
    %v1834 = vunpack.c.h.b16 %v1455
    %v1835 = vunpack.c.l.b16 %v1456
    %v1836 = vunpack.c.h.b16 %v1456
    %v1837 = vunpack.c.l.b16 %v1457
    %v1838 = vunpack.c.h.b16 %v1457
    %v1839 = vunpack.c.l.b16 %v1458
    %v1840 = vunpack.c.h.b16 %v1458
    %v1841 = vunpack.c.l.b16 %v1459
    %v1842 = vunpack.c.h.b16 %v1459
    %v1843 = vunpack.c.l.b16 %v1460
    %v1844 = vunpack.c.h.b16 %v1460
    %v1845 = vunpack.c.l.b16 %v1461
    %v1846 = vunpack.c.h.b16 %v1461
    %v1847 = vunpack.c.l.b16 %v1462
    %v1848 = vunpack.c.h.b16 %v1462
    %v1849 = vunpack.c.l.b16 %v1463
    %v1850 = vunpack.c.h.b16 %v1463
    %v1851 = vunpack.c.l.b16 %v1464
    %v1852 = vunpack.c.h.b16 %v1464
    %v1853 = vunpack.c.l.b16 %v1465
    %v1854 = vunpack.c.h.b16 %v1465
    %v1855 = vunpack.c.l.b16 %v1466
    %v1856 = vunpack.c.h.b16 %v1466
    %v1857 = vunpack.c.l.b16 %v1467
    %v1858 = vunpack.c.h.b16 %v1467
    %v1859 = vunpack.c.l.b16 %v1468
    %v1860 = vunpack.c.h.b16 %v1468
    %v1861 = vunpack.c.l.b16 %v1469
    %v1862 = vunpack.c.h.b16 %v1469
    %v1863 = vunpack.c.l.b16 %v1470
    %v1864 = vunpack.c.h.b16 %v1470
    %v1865 = vunpack.c.l.b16 %v1471
    %v1866 = vunpack.c.h.b16 %v1471
    %v1867 = vunpack.c.l.b16 %v1472
    %v1868 = vunpack.c.h.b16 %v1472
    %v1869 = vunpack.c.l.b16 %v1473
    %v1870 = vunpack.c.h.b16 %v1473
    %v1871 = vunpack.c.l.b16 %v1474
    %v1872 = vunpack.c.h.b16 %v1474
    %v1873 = vunpack.c.l.b16 %v1475
    %v1874 = vunpack.c.h.b16 %v1475
    %v1875 = vunpack.c.l.b16 %v1476
    %v1876 = vunpack.c.h.b16 %v1476
    %v1877 = vunpack.c.l.b16 %v1477
    %v1878 = vunpack.c.h.b16 %v1477
    %v1879 = vunpack.c.l.b16 %v1478
    %v1880 = vunpack.c.h.b16 %v1478
    %v1881 = vunpack.c.l.b16 %v1479
    %v1882 = vunpack.c.h.b16 %v1479
    %v1883 = vunpack.c.l.b16 %v1480
    %v1884 = vunpack.c.h.b16 %v1480
    %v1885 = vunpack.c.l.b16 %v1481
    %v1886 = vunpack.c.h.b16 %v1481
    %v1887 = vunpack.c.l.b16 %v1482
    %v1888 = vunpack.c.h.b16 %v1482
    %v1889 = vpack.c.b16 %v1637, %v1633
    %v1890 = vpack.c.b16 %v1638, %v1634
    %v1891 = vpack.c.b16 %v1639, %v1635
    %v1892 = vpack.c.b16 %v1640, %v1636
    %v1893 = vpack.c.b16 %v1645, %v1641
    %v1894 = vpack.c.b16 %v1646, %v1642
    %v1895 = vpack.c.b16 %v1647, %v1643
    %v1896 = vpack.c.b16 %v1648, %v1644
    %v1897 = vpack.c.b16 %v1653, %v1649
    %v1898 = vpack.c.b16 %v1654, %v1650
    %v1899 = vpack.c.b16 %v1655, %v1651
    %v1900 = vpack.c.b16 %v1656, %v1652
    %v1901 = vpack.c.b16 %v1661, %v1657
    %v1902 = vpack.c.b16 %v1662, %v1658
    %v1903 = vpack.c.b16 %v1663, %v1659
    %v1904 = vpack.c.b16 %v1664, %v1660
    %v1905 = vpack.c.b16 %v1669, %v1665
    %v1906 = vpack.c.b16 %v1670, %v1666
    %v1907 = vpack.c.b16 %v1671, %v1667
    %v1908 = vpack.c.b16 %v1672, %v1668
    %v1909 = vpack.c.b16 %v1677, %v1673
    %v1910 = vpack.c.b16 %v1678, %v1674
    %v1911 = vpack.c.b16 %v1679, %v1675
    %v1912 = vpack.c.b16 %v1680, %v1676
    %v1913 = vpack.c.b16 %v1685, %v1681
    %v1914 = vpack.c.b16 %v1686, %v1682
    %v1915 = vpack.c.b16 %v1687, %v1683
    %v1916 = vpack.c.b16 %v1688, %v1684
    %v1917 = vpack.c.b16 %v1693, %v1689
    %v1918 = vpack.c.b16 %v1694, %v1690
    %v1919 = vpack.c.b16 %v1695, %v1691
    %v1920 = vpack.c.b16 %v1696, %v1692
    %v1921 = vpack.c.b16 %v1701, %v1697
    %v1922 = vpack.c.b16 %v1702, %v1698
    %v1923 = vpack.c.b16 %v1703, %v1699
    %v1924 = vpack.c.b16 %v1704, %v1700
    %v1925 = vpack.c.b16 %v1709, %v1705
    %v1926 = vpack.c.b16 %v1710, %v1706
    %v1927 = vpack.c.b16 %v1711, %v1707
    %v1928 = vpack.c.b16 %v1712, %v1708
    %v1929 = vpack.c.b16 %v1717, %v1713
    %v1930 = vpack.c.b16 %v1718, %v1714
    %v1931 = vpack.c.b16 %v1719, %v1715
    %v1932 = vpack.c.b16 %v1720, %v1716
    %v1933 = vpack.c.b16 %v1725, %v1721
    %v1934 = vpack.c.b16 %v1726, %v1722
    %v1935 = vpack.c.b16 %v1727, %v1723
    %v1936 = vpack.c.b16 %v1728, %v1724
    %v1937 = vpack.c.b16 %v1733, %v1729
    %v1938 = vpack.c.b16 %v1734, %v1730
    %v1939 = vpack.c.b16 %v1735, %v1731
    %v1940 = vpack.c.b16 %v1736, %v1732
    %v1941 = vpack.c.b16 %v1741, %v1737
    %v1942 = vpack.c.b16 %v1742, %v1738
    %v1943 = vpack.c.b16 %v1743, %v1739
    %v1944 = vpack.c.b16 %v1744, %v1740
    %v1945 = vpack.c.b16 %v1749, %v1745
    %v1946 = vpack.c.b16 %v1750, %v1746
    %v1947 = vpack.c.b16 %v1751, %v1747
    %v1948 = vpack.c.b16 %v1752, %v1748
    %v1949 = vpack.c.b16 %v1757, %v1753
    %v1950 = vpack.c.b16 %v1758, %v1754
    %v1951 = vpack.c.b16 %v1759, %v1755
    %v1952 = vpack.c.b16 %v1760, %v1756
    %v1953 = vpack.c.b16 %v1765, %v1761
    %v1954 = vpack.c.b16 %v1766, %v1762
    %v1955 = vpack.c.b16 %v1767, %v1763
    %v1956 = vpack.c.b16 %v1768, %v1764
    %v1957 = vpack.c.b16 %v1773, %v1769
    %v1958 = vpack.c.b16 %v1774, %v1770
    %v1959 = vpack.c.b16 %v1775, %v1771
    %v1960 = vpack.c.b16 %v1776, %v1772
    %v1961 = vpack.c.b16 %v1781, %v1777
    %v1962 = vpack.c.b16 %v1782, %v1778
    %v1963 = vpack.c.b16 %v1783, %v1779
    %v1964 = vpack.c.b16 %v1784, %v1780
    %v1965 = vpack.c.b16 %v1789, %v1785
    %v1966 = vpack.c.b16 %v1790, %v1786
    %v1967 = vpack.c.b16 %v1791, %v1787
    %v1968 = vpack.c.b16 %v1792, %v1788
    %v1969 = vpack.c.b16 %v1797, %v1793
    %v1970 = vpack.c.b16 %v1798, %v1794
    %v1971 = vpack.c.b16 %v1799, %v1795
    %v1972 = vpack.c.b16 %v1800, %v1796
    %v1973 = vpack.c.b16 %v1805, %v1801
    %v1974 = vpack.c.b16 %v1806, %v1802
    %v1975 = vpack.c.b16 %v1807, %v1803
    %v1976 = vpack.c.b16 %v1808, %v1804
    %v1977 = vpack.c.b16 %v1813, %v1809
    %v1978 = vpack.c.b16 %v1814, %v1810
    %v1979 = vpack.c.b16 %v1815, %v1811
    %v1980 = vpack.c.b16 %v1816, %v1812
    %v1981 = vpack.c.b16 %v1821, %v1817
    %v1982 = vpack.c.b16 %v1822, %v1818
    %v1983 = vpack.c.b16 %v1823, %v1819
    %v1984 = vpack.c.b16 %v1824, %v1820
    %v1985 = vpack.c.b16 %v1829, %v1825
    %v1986 = vpack.c.b16 %v1830, %v1826
    %v1987 = vpack.c.b16 %v1831, %v1827
    %v1988 = vpack.c.b16 %v1832, %v1828
    %v1989 = vpack.c.b16 %v1837, %v1833
    %v1990 = vpack.c.b16 %v1838, %v1834
    %v1991 = vpack.c.b16 %v1839, %v1835
    %v1992 = vpack.c.b16 %v1840, %v1836
    %v1993 = vpack.c.b16 %v1845, %v1841
    %v1994 = vpack.c.b16 %v1846, %v1842
    %v1995 = vpack.c.b16 %v1847, %v1843
    %v1996 = vpack.c.b16 %v1848, %v1844
    %v1997 = vpack.c.b16 %v1853, %v1849
    %v1998 = vpack.c.b16 %v1854, %v1850
    %v1999 = vpack.c.b16 %v1855, %v1851
    %v2000 = vpack.c.b16 %v1856, %v1852
    %v2001 = vpack.c.b16 %v1861, %v1857
    %v2002 = vpack.c.b16 %v1862, %v1858
    %v2003 = vpack.c.b16 %v1863, %v1859
    %v2004 = vpack.c.b16 %v1864, %v1860
    %v2005 = vpack.c.b16 %v1869, %v1865
    %v2006 = vpack.c.b16 %v1870, %v1866
    %v2007 = vpack.c.b16 %v1871, %v1867
    %v2008 = vpack.c.b16 %v1872, %v1868
    %v2009 = vpack.c.b16 %v1877, %v1873
    %v2010 = vpack.c.b16 %v1878, %v1874
    %v2011 = vpack.c.b16 %v1879, %v1875
    %v2012 = vpack.c.b16 %v1880, %v1876
    %v2013 = vpack.c.b16 %v1885, %v1881
    %v2014 = vpack.c.b16 %v1886, %v1882
    %v2015 = vpack.c.b16 %v1887, %v1883
    %v2016 = vpack.c.b16 %v1888, %v1884
    %2145 = vmatprep.subr.bf16.mxu0 %v1890
    %2146 = vmatpush1.bf16.msra.mxu0 %v1889
    %2147 = vmatprep.subr.bf16.mxu0 %v1894
    %2148 = vmatpush1.bf16.msra.mxu0 %v1893
    %2149 = vmatprep.subr.bf16.mxu0 %v1898
    %2150 = vmatpush1.bf16.msra.mxu0 %v1897
    %2151 = vmatprep.subr.bf16.mxu0 %v1902
    %2152 = vmatpush1.bf16.msra.mxu0 %v1901
    %2153 = vmatprep.subr.bf16.mxu0 %v1906
    %2154 = vmatpush1.bf16.msra.mxu0 %v1905
    %2155 = vmatprep.subr.bf16.mxu0 %v1910
    %2156 = vmatpush1.bf16.msra.mxu0 %v1909
    %2157 = vmatprep.subr.bf16.mxu0 %v1914
    %2158 = vmatpush1.bf16.msra.mxu0 %v1913
    %2159 = vmatprep.subr.bf16.mxu0 %v1918
    %2160 = vmatpush1.bf16.msra.mxu0 %v1917
    %2161 = vmatprep.subr.bf16.mxu0 %v1922
    %2162 = vmatpush1.bf16.msra.mxu0 %v1921
    %2163 = vmatprep.subr.bf16.mxu0 %v1926
    %2164 = vmatpush1.bf16.msra.mxu0 %v1925
    %2165 = vmatprep.subr.bf16.mxu0 %v1930
    %2166 = vmatpush1.bf16.msra.mxu0 %v1929
    %2167 = vmatprep.subr.bf16.mxu0 %v1934
    %2168 = vmatpush1.bf16.msra.mxu0 %v1933
    %2169 = vmatprep.subr.bf16.mxu0 %v1938
    %2170 = vmatpush1.bf16.msra.mxu0 %v1937
    %2171 = vmatprep.subr.bf16.mxu0 %v1942
    %2172 = vmatpush1.bf16.msra.mxu0 %v1941
    %2173 = vmatprep.subr.bf16.mxu0 %v1946
    %2174 = vmatpush1.bf16.msra.mxu0 %v1945
    %2175 = vmatprep.subr.bf16.mxu0 %v1950
    %2176 = vmatpush1.bf16.msra.mxu0 %v1949
    %2177 = vmatprep.mubr.bf16.mxu0 %v1352
    %2178 = vmatmul.mubr.bf16.gmra.mrb[0].mxu0 %v1351
    %v2179 = vpop.f32.mrb[0].mxu0
    %v2180 = vadd.f32 %v1488, %v2179
    %v2181 = vpop.f32.mrb[0].mxu0
    %v2182 = vadd.f32 %v1492, %v2181
    %v2183 = vpop.f32.mrb[0].mxu0
    %v2184 = vpop.f32.mrb[0].mxu0
    %2185 = vdwg.mxu0
    %2186 = vmatprep.subr.bf16.mxu0 %v1954
    %2187 = vmatpush1.bf16.msra.mxu0 %v1953
    %2188 = vmatprep.subr.bf16.mxu0 %v1958
    %2189 = vmatpush1.bf16.msra.mxu0 %v1957
    %2190 = vmatprep.subr.bf16.mxu0 %v1962
    %2191 = vmatpush1.bf16.msra.mxu0 %v1961
    %2192 = vmatprep.subr.bf16.mxu0 %v1966
    %2193 = vmatpush1.bf16.msra.mxu0 %v1965
    %2194 = vmatprep.subr.bf16.mxu0 %v1970
    %2195 = vmatpush1.bf16.msra.mxu0 %v1969
    %2196 = vmatprep.subr.bf16.mxu0 %v1974
    %2197 = vmatpush1.bf16.msra.mxu0 %v1973
    %2198 = vmatprep.subr.bf16.mxu0 %v1978
    %2199 = vmatpush1.bf16.msra.mxu0 %v1977
    %2200 = vmatprep.subr.bf16.mxu0 %v1982
    %2201 = vmatpush1.bf16.msra.mxu0 %v1981
    %2202 = vmatprep.subr.bf16.mxu0 %v1986
    %2203 = vmatpush1.bf16.msra.mxu0 %v1985
    %2204 = vmatprep.subr.bf16.mxu0 %v1990
    %2205 = vmatpush1.bf16.msra.mxu0 %v1989
    %2206 = vmatprep.subr.bf16.mxu0 %v1994
    %2207 = vmatpush1.bf16.msra.mxu0 %v1993
    %2208 = vmatprep.subr.bf16.mxu0 %v1998
    %2209 = vmatpush1.bf16.msra.mxu0 %v1997
    %2210 = vmatprep.subr.bf16.mxu0 %v2002
    %2211 = vmatpush1.bf16.msra.mxu0 %v2001
    %2212 = vmatprep.subr.bf16.mxu0 %v2006
    %2213 = vmatpush1.bf16.msra.mxu0 %v2005
    %2214 = vmatprep.subr.bf16.mxu0 %v2010
    %2215 = vmatpush1.bf16.msra.mxu0 %v2009
    %2216 = vmatprep.subr.bf16.mxu0 %v2014
    %2217 = vmatpush1.bf16.msra.mxu0 %v2013
    %2218 = vmatprep.mubr.bf16.mxu0 %v1354
    %2219 = vmatmul.mubr.bf16.gmra.mrb[0].mxu0 %v1353
    %v2220 = vpop.f32.mrb[0].mxu0
    %v2221 = vadd.f32 %v2180, %v2220
    %v2222 = vpop.f32.mrb[0].mxu0
    %v2223 = vadd.f32 %v2182, %v2222
    %v2224 = vpop.f32.mrb[0].mxu0
    %v2225 = vpop.f32.mrb[0].mxu0
    %2226 = vdwg.mxu0
    %2227 = vmatprep.subr.bf16.mxu0 %v1892
    %2228 = vmatpush1.bf16.msra.mxu0 %v1891
    %2229 = vmatprep.subr.bf16.mxu0 %v1896
    %2230 = vmatpush1.bf16.msra.mxu0 %v1895
    %2231 = vmatprep.subr.bf16.mxu0 %v1900
    %2232 = vmatpush1.bf16.msra.mxu0 %v1899
    %2233 = vmatprep.subr.bf16.mxu0 %v1904
    %2234 = vmatpush1.bf16.msra.mxu0 %v1903
    %2235 = vmatprep.subr.bf16.mxu0 %v1908
    %2236 = vmatpush1.bf16.msra.mxu0 %v1907
    %2237 = vmatprep.subr.bf16.mxu0 %v1912
    %2238 = vmatpush1.bf16.msra.mxu0 %v1911
    %2239 = vmatprep.subr.bf16.mxu0 %v1916
    %2240 = vmatpush1.bf16.msra.mxu0 %v1915
    %2241 = vmatprep.subr.bf16.mxu0 %v1920
    %2242 = vmatpush1.bf16.msra.mxu0 %v1919
    %2243 = vmatprep.subr.bf16.mxu0 %v1924
    %2244 = vmatpush1.bf16.msra.mxu0 %v1923
    %2245 = vmatprep.subr.bf16.mxu0 %v1928
    %2246 = vmatpush1.bf16.msra.mxu0 %v1927
    %2247 = vmatprep.subr.bf16.mxu0 %v1932
    %2248 = vmatpush1.bf16.msra.mxu0 %v1931
    %2249 = vmatprep.subr.bf16.mxu0 %v1936
    %2250 = vmatpush1.bf16.msra.mxu0 %v1935
    %2251 = vmatprep.subr.bf16.mxu0 %v1940
    %2252 = vmatpush1.bf16.msra.mxu0 %v1939
    %2253 = vmatprep.subr.bf16.mxu0 %v1944
    %2254 = vmatpush1.bf16.msra.mxu0 %v1943
    %2255 = vmatprep.subr.bf16.mxu0 %v1948
    %2256 = vmatpush1.bf16.msra.mxu0 %v1947
    %2257 = vmatprep.subr.bf16.mxu0 %v1952
    %2258 = vmatpush1.bf16.msra.mxu0 %v1951
    %2259 = vmatprep.mubr.bf16.mxu0 %v1352
    %2260 = vmatmul.mubr.bf16.gmra.mrb[0].mxu0 %v1351
    %v2261 = vpop.f32.mrb[0].mxu0
    %v2262 = vadd.f32 %v1496, %v2261
    %v2263 = vpop.f32.mrb[0].mxu0
    %v2264 = vadd.f32 %v1500, %v2263
    %v2265 = vpop.f32.mrb[0].mxu0
    %v2266 = vpop.f32.mrb[0].mxu0
    %2267 = vdwg.mxu0
    %2268 = vmatprep.subr.bf16.mxu0 %v1956
    %2269 = vmatpush1.bf16.msra.mxu0 %v1955
    %2270 = vmatprep.subr.bf16.mxu0 %v1960
    %2271 = vmatpush1.bf16.msra.mxu0 %v1959
    %2272 = vmatprep.subr.bf16.mxu0 %v1964
    %2273 = vmatpush1.bf16.msra.mxu0 %v1963
    %2274 = vmatprep.subr.bf16.mxu0 %v1968
    %2275 = vmatpush1.bf16.msra.mxu0 %v1967
    %2276 = vmatprep.subr.bf16.mxu0 %v1972
    %2277 = vmatpush1.bf16.msra.mxu0 %v1971
    %2278 = vmatprep.subr.bf16.mxu0 %v1976
    %2279 = vmatpush1.bf16.msra.mxu0 %v1975
    %2280 = vmatprep.subr.bf16.mxu0 %v1980
    %2281 = vmatpush1.bf16.msra.mxu0 %v1979
    %2282 = vmatprep.subr.bf16.mxu0 %v1984
    %2283 = vmatpush1.bf16.msra.mxu0 %v1983
    %2284 = vmatprep.subr.bf16.mxu0 %v1988
    %2285 = vmatpush1.bf16.msra.mxu0 %v1987
    %2286 = vmatprep.subr.bf16.mxu0 %v1992
    %2287 = vmatpush1.bf16.msra.mxu0 %v1991
    %2288 = vmatprep.subr.bf16.mxu0 %v1996
    %2289 = vmatpush1.bf16.msra.mxu0 %v1995
    %2290 = vmatprep.subr.bf16.mxu0 %v2000
    %2291 = vmatpush1.bf16.msra.mxu0 %v1999
    %2292 = vmatprep.subr.bf16.mxu0 %v2004
    %2293 = vmatpush1.bf16.msra.mxu0 %v2003
    %2294 = vmatprep.subr.bf16.mxu0 %v2008
    %2295 = vmatpush1.bf16.msra.mxu0 %v2007
    %2296 = vmatprep.subr.bf16.mxu0 %v2012
    %2297 = vmatpush1.bf16.msra.mxu0 %v2011
    %2298 = vmatprep.subr.bf16.mxu0 %v2016
    %2299 = vmatpush1.bf16.msra.mxu0 %v2015
    %2300 = vmatprep.mubr.bf16.mxu0 %v1354
    %2301 = vmatmul.mubr.bf16.gmra.mrb[0].mxu0 %v1353
    %v2302 = vpop.f32.mrb[0].mxu0
    %v2303 = vadd.f32 %v2262, %v2302
    %v2304 = vpop.f32.mrb[0].mxu0
    %v2305 = vadd.f32 %v2264, %v2304
    %v2306 = vpop.f32.mrb[0].mxu0
    %v2307 = vpop.f32.mrb[0].mxu0
    %2308 = vdwg.mxu0
    %v2309 = vmax.f32 %v2221, 0.0
    %v2310 = vmax.f32 %v2223, 0.0
    %v2311 = vmax.f32 %v2303, 0.0
    %v2312 = vmax.f32 %v2305, 0.0
    %v2313 = vpack.c.bf16 %v2309, %v2309
    %v2314 = vpack.c.bf16 %v2310, %v2310
    %v2315 = vpack.c.bf16 %v2311, %v2311
    %v2316 = vpack.c.bf16 %v2312, %v2312
    %v2317 = vld [vmem:[#allocation7] sm:$0xf]
    %v2318 = vld [vmem:[#allocation7 + $0x4] sm:$0xf]
    %v2319 = vld [vmem:[#allocation7 + $0x8] sm:$0xf]
    %v2320 = vld [vmem:[#allocation7 + $0xc] sm:$0xf]
    %v2321 = vld [vmem:[#allocation7 + $0x10] sm:$0xf]
    %v2322 = vld [vmem:[#allocation7 + $0x14] sm:$0xf]
    %v2323 = vld [vmem:[#allocation7 + $0x18] sm:$0xf]
    %v2324 = vld [vmem:[#allocation7 + $0x1c] sm:$0xf]
    %v2325 = vld [vmem:[#allocation7 + $0x20] sm:$0xf]
    %v2326 = vld [vmem:[#allocation7 + $0x24] sm:$0xf]
    %v2327 = vld [vmem:[#allocation7 + $0x28] sm:$0xf]
    %v2328 = vld [vmem:[#allocation7 + $0x2c] sm:$0xf]
    %v2329 = vld [vmem:[#allocation7 + $0x30] sm:$0xf]
    %v2330 = vld [vmem:[#allocation7 + $0x34] sm:$0xf]
    %v2331 = vld [vmem:[#allocation7 + $0x38] sm:$0xf]
    %v2332 = vld [vmem:[#allocation7 + $0x3c] sm:$0xf]
    %v2333 = vld [vmem:[#allocation7 + $0x40] sm:$0xf]
    %v2334 = vld [vmem:[#allocation7 + $0x44] sm:$0xf]
    %v2335 = vld [vmem:[#allocation7 + $0x48] sm:$0xf]
    %v2336 = vld [vmem:[#allocation7 + $0x4c] sm:$0xf]
    %v2337 = vld [vmem:[#allocation7 + $0x50] sm:$0xf]
    %v2338 = vld [vmem:[#allocation7 + $0x54] sm:$0xf]
    %v2339 = vld [vmem:[#allocation7 + $0x58] sm:$0xf]
    %v2340 = vld [vmem:[#allocation7 + $0x5c] sm:$0xf]
    %v2341 = vld [vmem:[#allocation7 + $0x60] sm:$0xf]
    %v2342 = vld [vmem:[#allocation7 + $0x64] sm:$0xf]
    %v2343 = vld [vmem:[#allocation7 + $0x68] sm:$0xf]
    %v2344 = vld [vmem:[#allocation7 + $0x6c] sm:$0xf]
    %v2345 = vld [vmem:[#allocation7 + $0x70] sm:$0xf]
    %v2346 = vld [vmem:[#allocation7 + $0x74] sm:$0xf]
    %v2347 = vld [vmem:[#allocation7 + $0x78] sm:$0xf]
    %v2348 = vld [vmem:[#allocation7 + $0x7c] sm:$0xf]
    %v2349 = vld [vmem:[#allocation7 + $0x80] sm:$0xf]
    %v2350 = vld [vmem:[#allocation7 + $0x84] sm:$0xf]
    %v2351 = vld [vmem:[#allocation7 + $0x88] sm:$0xf]
    %v2352 = vld [vmem:[#allocation7 + $0x8c] sm:$0xf]
    %v2353 = vld [vmem:[#allocation7 + $0x90] sm:$0xf]
    %v2354 = vld [vmem:[#allocation7 + $0x94] sm:$0xf]
    %v2355 = vld [vmem:[#allocation7 + $0x98] sm:$0xf]
    %v2356 = vld [vmem:[#allocation7 + $0x9c] sm:$0xf]
    %v2357 = vld [vmem:[#allocation7 + $0xa0] sm:$0xf]
    %v2358 = vld [vmem:[#allocation7 + $0xa4] sm:$0xf]
    %v2359 = vld [vmem:[#allocation7 + $0xa8] sm:$0xf]
    %v2360 = vld [vmem:[#allocation7 + $0xac] sm:$0xf]
    %v2361 = vld [vmem:[#allocation7 + $0xb0] sm:$0xf]
    %v2362 = vld [vmem:[#allocation7 + $0xb4] sm:$0xf]
    %v2363 = vld [vmem:[#allocation7 + $0xb8] sm:$0xf]
    %v2364 = vld [vmem:[#allocation7 + $0xbc] sm:$0xf]
    %v2365 = vld [vmem:[#allocation7 + $0xc0] sm:$0xf]
    %v2366 = vld [vmem:[#allocation7 + $0xc4] sm:$0xf]
    %v2367 = vld [vmem:[#allocation7 + $0xc8] sm:$0xf]
    %v2368 = vld [vmem:[#allocation7 + $0xcc] sm:$0xf]
    %v2369 = vld [vmem:[#allocation7 + $0xd0] sm:$0xf]
    %v2370 = vld [vmem:[#allocation7 + $0xd4] sm:$0xf]
    %v2371 = vld [vmem:[#allocation7 + $0xd8] sm:$0xf]
    %v2372 = vld [vmem:[#allocation7 + $0xdc] sm:$0xf]
    %v2373 = vld [vmem:[#allocation7 + $0xe0] sm:$0xf]
    %v2374 = vld [vmem:[#allocation7 + $0xe4] sm:$0xf]
    %v2375 = vld [vmem:[#allocation7 + $0xe8] sm:$0xf]
    %v2376 = vld [vmem:[#allocation7 + $0xec] sm:$0xf]
    %v2377 = vld [vmem:[#allocation7 + $0xf0] sm:$0xf]
    %v2378 = vld [vmem:[#allocation7 + $0xf4] sm:$0xf]
    %v2379 = vld [vmem:[#allocation7 + $0xf8] sm:$0xf]
    %v2380 = vld [vmem:[#allocation7 + $0xfc] sm:$0xf]
    %v2381 = vld [vmem:[%s8] sm:$0x1]
    %v2383 = vlaneseq
    %v2384 = vshrl.u32 %v2383, 7
    %v2385 = vsub.s32 0, %v2384
    %v2386 = vrot.slane %v2381, %v2385
    %v2452 = vunpack.c.l.b16 %v2317
    %v2453 = vunpack.c.l.b16 %v2318
    %v2454 = vunpack.c.l.b16 %v2319
    %v2455 = vunpack.c.l.b16 %v2320
    %v2456 = vunpack.c.l.b16 %v2321
    %v2457 = vunpack.c.l.b16 %v2322
    %v2458 = vunpack.c.l.b16 %v2323
    %v2459 = vunpack.c.l.b16 %v2324
    %v2460 = vunpack.c.l.b16 %v2325
    %v2461 = vunpack.c.l.b16 %v2326
    %v2462 = vunpack.c.l.b16 %v2327
    %v2463 = vunpack.c.l.b16 %v2328
    %v2464 = vunpack.c.l.b16 %v2329
    %v2465 = vunpack.c.l.b16 %v2330
    %v2466 = vunpack.c.l.b16 %v2331
    %v2467 = vunpack.c.l.b16 %v2332
    %v2468 = vunpack.c.l.b16 %v2333
    %v2469 = vunpack.c.l.b16 %v2334
    %v2470 = vunpack.c.l.b16 %v2335
    %v2471 = vunpack.c.l.b16 %v2336
    %v2472 = vunpack.c.l.b16 %v2337
    %v2473 = vunpack.c.l.b16 %v2338
    %v2474 = vunpack.c.l.b16 %v2339
    %v2475 = vunpack.c.l.b16 %v2340
    %v2476 = vunpack.c.l.b16 %v2341
    %v2477 = vunpack.c.l.b16 %v2342
    %v2478 = vunpack.c.l.b16 %v2343
    %v2479 = vunpack.c.l.b16 %v2344
    %v2480 = vunpack.c.l.b16 %v2345
    %v2481 = vunpack.c.l.b16 %v2346
    %v2482 = vunpack.c.l.b16 %v2347
    %v2483 = vunpack.c.l.b16 %v2348
    %v2484 = vunpack.c.l.b16 %v2349
    %v2485 = vunpack.c.l.b16 %v2350
    %v2486 = vunpack.c.l.b16 %v2351
    %v2487 = vunpack.c.l.b16 %v2352
    %v2488 = vunpack.c.l.b16 %v2353
    %v2489 = vunpack.c.l.b16 %v2354
    %v2490 = vunpack.c.l.b16 %v2355
    %v2491 = vunpack.c.l.b16 %v2356
    %v2492 = vunpack.c.l.b16 %v2357
    %v2493 = vunpack.c.l.b16 %v2358
    %v2494 = vunpack.c.l.b16 %v2359
    %v2495 = vunpack.c.l.b16 %v2360
    %v2496 = vunpack.c.l.b16 %v2361
    %v2497 = vunpack.c.l.b16 %v2362
    %v2498 = vunpack.c.l.b16 %v2363
    %v2499 = vunpack.c.l.b16 %v2364
    %v2500 = vunpack.c.l.b16 %v2365
    %v2501 = vunpack.c.l.b16 %v2366
    %v2502 = vunpack.c.l.b16 %v2367
    %v2503 = vunpack.c.l.b16 %v2368
    %v2504 = vunpack.c.l.b16 %v2369
    %v2505 = vunpack.c.l.b16 %v2370
    %v2506 = vunpack.c.l.b16 %v2371
    %v2507 = vunpack.c.l.b16 %v2372
    %v2508 = vunpack.c.l.b16 %v2373
    %v2509 = vunpack.c.l.b16 %v2374
    %v2510 = vunpack.c.l.b16 %v2375
    %v2511 = vunpack.c.l.b16 %v2376
    %v2512 = vunpack.c.l.b16 %v2377
    %v2513 = vunpack.c.l.b16 %v2378
    %v2514 = vunpack.c.l.b16 %v2379
    %v2515 = vunpack.c.l.b16 %v2380
    %v2516 = vpack.c.b16 %v2453, %v2452
    %v2517 = vpack.c.b16 %v2455, %v2454
    %v2518 = vpack.c.b16 %v2457, %v2456
    %v2519 = vpack.c.b16 %v2459, %v2458
    %v2520 = vpack.c.b16 %v2461, %v2460
    %v2521 = vpack.c.b16 %v2463, %v2462
    %v2522 = vpack.c.b16 %v2465, %v2464
    %v2523 = vpack.c.b16 %v2467, %v2466
    %v2524 = vpack.c.b16 %v2469, %v2468
    %v2525 = vpack.c.b16 %v2471, %v2470
    %v2526 = vpack.c.b16 %v2473, %v2472
    %v2527 = vpack.c.b16 %v2475, %v2474
    %v2528 = vpack.c.b16 %v2477, %v2476
    %v2529 = vpack.c.b16 %v2479, %v2478
    %v2530 = vpack.c.b16 %v2481, %v2480
    %v2531 = vpack.c.b16 %v2483, %v2482
    %v2532 = vpack.c.b16 %v2485, %v2484
    %v2533 = vpack.c.b16 %v2487, %v2486
    %v2534 = vpack.c.b16 %v2489, %v2488
    %v2535 = vpack.c.b16 %v2491, %v2490
    %v2536 = vpack.c.b16 %v2493, %v2492
    %v2537 = vpack.c.b16 %v2495, %v2494
    %v2538 = vpack.c.b16 %v2497, %v2496
    %v2539 = vpack.c.b16 %v2499, %v2498
    %v2540 = vpack.c.b16 %v2501, %v2500
    %v2541 = vpack.c.b16 %v2503, %v2502
    %v2542 = vpack.c.b16 %v2505, %v2504
    %v2543 = vpack.c.b16 %v2507, %v2506
    %v2544 = vpack.c.b16 %v2509, %v2508
    %v2545 = vpack.c.b16 %v2511, %v2510
    %v2546 = vpack.c.b16 %v2513, %v2512
    %v2547 = vpack.c.b16 %v2515, %v2514
    %2580 = vmatprep.subr.bf16.mxu0 0
    %2581 = vmatpush1.bf16.msra.mxu0 %v2516
    %2582 = vmatprep.subr.bf16.mxu0 0
    %2583 = vmatpush1.bf16.msra.mxu0 %v2517
    %2584 = vmatprep.subr.bf16.mxu0 0
    %2585 = vmatpush1.bf16.msra.mxu0 %v2518
    %2586 = vmatprep.subr.bf16.mxu0 0
    %2587 = vmatpush1.bf16.msra.mxu0 %v2519
    %2588 = vmatprep.subr.bf16.mxu0 0
    %2589 = vmatpush1.bf16.msra.mxu0 %v2520
    %2590 = vmatprep.subr.bf16.mxu0 0
    %2591 = vmatpush1.bf16.msra.mxu0 %v2521
    %2592 = vmatprep.subr.bf16.mxu0 0
    %2593 = vmatpush1.bf16.msra.mxu0 %v2522
    %2594 = vmatprep.subr.bf16.mxu0 0
    %2595 = vmatpush1.bf16.msra.mxu0 %v2523
    %2596 = vmatprep.subr.bf16.mxu0 0
    %2597 = vmatpush1.bf16.msra.mxu0 %v2524
    %2598 = vmatprep.subr.bf16.mxu0 0
    %2599 = vmatpush1.bf16.msra.mxu0 %v2525
    %2600 = vmatprep.subr.bf16.mxu0 0
    %2601 = vmatpush1.bf16.msra.mxu0 %v2526
    %2602 = vmatprep.subr.bf16.mxu0 0
    %2603 = vmatpush1.bf16.msra.mxu0 %v2527
    %2604 = vmatprep.subr.bf16.mxu0 0
    %2605 = vmatpush1.bf16.msra.mxu0 %v2528
    %2606 = vmatprep.subr.bf16.mxu0 0
    %2607 = vmatpush1.bf16.msra.mxu0 %v2529
    %2608 = vmatprep.subr.bf16.mxu0 0
    %2609 = vmatpush1.bf16.msra.mxu0 %v2530
    %2610 = vmatprep.subr.bf16.mxu0 0
    %2611 = vmatpush1.bf16.msra.mxu0 %v2531
    %2612 = vmatprep.mubr.bf16.mxu0 %v2314
    %2613 = vmatmul.mubr.bf16.gmra.mrb[0].mxu0 %v2313
    %v2614 = vpop.f32.mrb[0].mxu0
    %v2615 = vadd.f32 %v2386, %v2614
    %v2616 = vpop.f32.mrb[0].mxu0
    %v2617 = vpop.f32.mrb[0].mxu0
    %v2618 = vpop.f32.mrb[0].mxu0
    %2619 = vdwg.mxu0
    %2620 = vmatprep.subr.bf16.mxu0 0
    %2621 = vmatpush1.bf16.msra.mxu0 %v2532
    %2622 = vmatprep.subr.bf16.mxu0 0
    %2623 = vmatpush1.bf16.msra.mxu0 %v2533
    %2624 = vmatprep.subr.bf16.mxu0 0
    %2625 = vmatpush1.bf16.msra.mxu0 %v2534
    %2626 = vmatprep.subr.bf16.mxu0 0
    %2627 = vmatpush1.bf16.msra.mxu0 %v2535
    %2628 = vmatprep.subr.bf16.mxu0 0
    %2629 = vmatpush1.bf16.msra.mxu0 %v2536
    %2630 = vmatprep.subr.bf16.mxu0 0
    %2631 = vmatpush1.bf16.msra.mxu0 %v2537
    %2632 = vmatprep.subr.bf16.mxu0 0
    %2633 = vmatpush1.bf16.msra.mxu0 %v2538
    %2634 = vmatprep.subr.bf16.mxu0 0
    %2635 = vmatpush1.bf16.msra.mxu0 %v2539
    %2636 = vmatprep.subr.bf16.mxu0 0
    %2637 = vmatpush1.bf16.msra.mxu0 %v2540
    %2638 = vmatprep.subr.bf16.mxu0 0
    %2639 = vmatpush1.bf16.msra.mxu0 %v2541
    %2640 = vmatprep.subr.bf16.mxu0 0
    %2641 = vmatpush1.bf16.msra.mxu0 %v2542
    %2642 = vmatprep.subr.bf16.mxu0 0
    %2643 = vmatpush1.bf16.msra.mxu0 %v2543
    %2644 = vmatprep.subr.bf16.mxu0 0
    %2645 = vmatpush1.bf16.msra.mxu0 %v2544
    %2646 = vmatprep.subr.bf16.mxu0 0
    %2647 = vmatpush1.bf16.msra.mxu0 %v2545
    %2648 = vmatprep.subr.bf16.mxu0 0
    %2649 = vmatpush1.bf16.msra.mxu0 %v2546
    %2650 = vmatprep.subr.bf16.mxu0 0
    %2651 = vmatpush1.bf16.msra.mxu0 %v2547
    %2652 = vmatprep.mubr.bf16.mxu0 %v2316
    %2653 = vmatmul.mubr.bf16.gmra.mrb[0].mxu0 %v2315
    %v2654 = vpop.f32.mrb[0].mxu0
    %v2655 = vadd.f32 %v2615, %v2654
    %v2656 = vpop.f32.mrb[0].mxu0
    %v2657 = vpop.f32.mrb[0].mxu0
    %v2658 = vpop.f32.mrb[0].mxu0
    %2659 = vdwg.mxu0
    %2660 = vst [vmem:[%s9] sm:$0xff] %v2655
    // Predicated region
    $region54: #{mlp_forward.1} parent=1 // pred_check
      _
    $region55: #{mlp_forward.1} parent=1 // pred_check_branch
      %2662 = sbr.rel (0) target = $region57
    $region56: #{mlp_forward.1} parent=1 // pred_region
      _
    $region57: #{mlp_forward.1} parent=1 // pred_fallthru
      _
    // Predicated region
    $region58: #{mlp_forward.1} parent=1 // pred_check
      _
    $region59: #{mlp_forward.1} parent=1 // pred_check_branch
      %2664 = sbr.rel (0) target = $region61
    $region60: #{mlp_forward.1} parent=1 // pred_region
      _
    $region61: #{mlp_forward.1} parent=1 // pred_fallthru
      _
    %2665 = vsyncpa [#allocation3], 1
    %2666 = vsyncpa [#allocation5], 1
    %2667 = vsyncpa [#allocation8], 1

</llo_original>
